<compile_context>
chip_gen: v7x
topology: tpu7x:2x2x1
jax: 0.10.0
libtpu: 0.0.40
codegen_flags: <defaults>
</compile_context>

<pallas_src>
import jax
import jax.numpy as jnp
from jax import lax
from jax.experimental import pallas as pl
from jax.experimental.pallas import tpu as pltpu

LANE = 128


def _round_up(n, m):
    return ((n + m - 1) // m) * m


def make_gru_kernel(keep_dim: bool, Hp: int, T: int, bt: int):
    """Kernel computing the whole GRU sequence (and optional fc) for one batch tile."""
    H3 = 3 * Hp

    def kernel(*refs):
        if keep_dim:
            (x_ref, w_ih_ref, w_hh_ref, b_ih_ref, b_hh_ref,
             fc_w_ref, fc_b_ref, y_ref, hN_ref, gi_ref, hh_ref) = refs
        else:
            (x_ref, w_ih_ref, w_hh_ref, b_ih_ref, b_hh_ref,
             y_ref, hN_ref, gi_ref, hh_ref) = refs

        Ip = x_ref.shape[-1]

        # ---- (1) Input projection for all timesteps: one big MXU matmul. ----
        # (bt*T, Ip) @ (Ip, 3Hp) -> stored in VMEM scratch gi_ref.
        # The reshape only collapses leading dims (free relayout when T % 8 == 0).
        x2 = x_ref[...].reshape(bt * T, Ip)
        gi = jnp.dot(x2, w_ih_ref[...],
                     preferred_element_type=jnp.float32) + b_ih_ref[...]
        gi_ref[...] = gi.reshape(bt, T, H3)

        w_hh = w_hh_ref[...]                                    # (Hp, 3Hp)
        # Hoisted out of the time loop (JAX does not CSE broadcast_in_dim).
        b_hh_b = jnp.broadcast_to(b_hh_ref[...], (bt, H3))      # (bt, 3Hp)

        h0 = jnp.zeros((bt, Hp), jnp.float32)

        # TODO(synk): for very long sequences, stage w_hh in MXU weight regs
        # across the loop via pltpu.matmul_push_rhs / matmul_acc_lhs.
        def step(t, h):
            gi_t = gi_ref[:, pl.ds(t, 1), :].reshape(bt, H3)    # (bt, 3Hp)
            gh = jnp.dot(h, w_hh,
                         preferred_element_type=jnp.float32) + b_hh_b
            r = jax.nn.sigmoid(gi_t[:, :Hp] + gh[:, :Hp])
            z = jax.nn.sigmoid(gi_t[:, Hp:2 * Hp] + gh[:, Hp:2 * Hp])
            n = jnp.tanh(gi_t[:, 2 * Hp:] + r * gh[:, 2 * Hp:])
            h_new = (1.0 - z) * n + z * h
            # Lane-dense (Hp = multiple of 128) store into VMEM scratch only;
            # the HBM-backed output ref is written once, after the loop.
            hh_ref[:, pl.ds(t, 1), :] = h_new[:, None, :]
            return h_new

        if T <= 64:
            # Small static T: fully unroll so adjacent steps' MXU / EUP / VPU
            # work can interleave instead of serializing.
            h = h0
            for t in range(T):
                h = step(t, h)
            h_final = h
        else:
            h_final = lax.fori_loop(0, T, step, h0)

        hN_ref[...] = h_final

        # ---- (2) Epilogue: one big fc matmul + one lane-dense bulk store. ----
        h_all = hh_ref[...]                                     # (bt, T, Hp)
        if keep_dim:
            y2 = jnp.dot(h_all.reshape(bt * T, Hp), fc_w_ref[...],
                         preferred_element_type=jnp.float32) + fc_b_ref[...]
            y_ref[...] = y2.reshape(bt, T, Ip)
        else:
            y_ref[...] = h_all

    return kernel


def _pad_gate_mat(w, H, Hp, Kin, Kp):
    """PyTorch-layout (3H, Kin) gate matrix -> per-gate padded, transposed (Kp, 3Hp)."""
    gates = []
    for g in range(3):
        wg = w[g * H:(g + 1) * H, :]                            # (H, Kin)
        gates.append(jnp.pad(wg, ((0, Hp - H), (0, Kp - Kin))))
    return jnp.concatenate(gates, axis=0).T                     # (Kp, 3Hp)


def _pad_gate_bias(b, H, Hp):
    gates = [jnp.pad(b[g * H:(g + 1) * H], (0, Hp - H)) for g in range(3)]
    return jnp.concatenate(gates)[None, :]                      # (1, 3Hp)


def recurrent_block_forward(x, params, keep_dim, batch_tile=None):
    """Pallas-backed equivalent of RecurrentBlock.forward. Returns (y, hidden)."""
    B, T, I = x.shape
    H = params["w_hh"].shape[1]
    Hp = _round_up(H, LANE)
    Ip = _round_up(I, LANE)
    out_dim = I if keep_dim else H
    outp = Ip if keep_dim else Hp

    bt = batch_tile if batch_tile is not None else (B if B <= 8 else 8)
    assert B % bt == 0, "batch must be divisible by the batch tile"

    # One-time padding / transposition outside the kernel (free XLA ops).
    x_p = jnp.pad(x.astype(jnp.float32), ((0, 0), (0, 0), (0, Ip - I)))
    w_ih_t = _pad_gate_mat(params["w_ih"], H, Hp, I, Ip)         # (Ip, 3Hp)
    w_hh_t = _pad_gate_mat(params["w_hh"], H, Hp, H, Hp)         # (Hp, 3Hp)
    b_ih_p = _pad_gate_bias(params["b_ih"], H, Hp)               # (1, 3Hp)
    b_hh_p = _pad_gate_bias(params["b_hh"], H, Hp)               # (1, 3Hp)

    inputs = [x_p, w_ih_t, w_hh_t, b_ih_p, b_hh_p]
    in_specs = [
        pl.BlockSpec((bt, T, Ip), lambda i: (i, 0, 0)),
        pl.BlockSpec((Ip, 3 * Hp), lambda i: (0, 0)),
        pl.BlockSpec((Hp, 3 * Hp), lambda i: (0, 0)),
        pl.BlockSpec((1, 3 * Hp), lambda i: (0, 0)),
        pl.BlockSpec((1, 3 * Hp), lambda i: (0, 0)),
    ]
    if keep_dim:
        fc_w_t = jnp.pad(params["fc_w"].T, ((0, Hp - H), (0, Ip - I)))  # (Hp, Ip)
        fc_b_p = jnp.pad(params["fc_b"], (0, Ip - I))[None, :]          # (1, Ip)
        inputs += [fc_w_t, fc_b_p]
        in_specs += [
            pl.BlockSpec((Hp, Ip), lambda i: (0, 0)),
            pl.BlockSpec((1, Ip), lambda i: (0, 0)),
        ]

    out_shapes = (
        jax.ShapeDtypeStruct((B, T, outp), jnp.float32),
        jax.ShapeDtypeStruct((B, Hp), jnp.float32),
    )
    out_specs = (
        pl.BlockSpec((bt, T, outp), lambda i: (i, 0, 0)),
        pl.BlockSpec((bt, Hp), lambda i: (i, 0)),
    )

    grid_spec = pltpu.PrefetchScalarGridSpec(
        num_scalar_prefetch=0,
        grid=(B // bt,),
        in_specs=in_specs,
        out_specs=out_specs,
        scratch_shapes=[
            pltpu.VMEM((bt, T, 3 * Hp), jnp.float32),   # gi: input projections
            pltpu.VMEM((bt, T, Hp), jnp.float32),       # per-step hidden states
        ],
    )

    y_p, h_p = pl.pallas_call(
        make_gru_kernel(keep_dim, Hp, T, bt),
        out_shape=out_shapes,
        grid_spec=grid_spec,
        compiler_params=pltpu.CompilerParams(
            dimension_semantics=("parallel",),          # batch tiles independent
            vmem_limit_bytes=32 * 1024 * 1024,          # safe on v5e/v6e/v7x
        ),
    )(*inputs)

    y = y_p[:, :, :out_dim]
    hidden = h_p[:, :H][None, :, :]                      # (num_layers=1, B, H)
    return y, hidden


def gru_reference(x, params, keep_dim):
    """Pure-JAX reference for correctness checking."""
    H = params["w_hh"].shape[1]
    w_ih, w_hh = params["w_ih"], params["w_hh"]
    b_ih, b_hh = params["b_ih"], params["b_hh"]
    B, T, I = x.shape

    def step(h, x_t):
        gi = x_t @ w_ih.T + b_ih
        gh = h @ w_hh.T + b_hh
        r = jax.nn.sigmoid(gi[:, :H] + gh[:, :H])
        z = jax.nn.sigmoid(gi[:, H:2 * H] + gh[:, H:2 * H])
        n = jnp.tanh(gi[:, 2 * H:] + r * gh[:, 2 * H:])
        h_new = (1.0 - z) * n + z * h
        return h_new, h_new

    hT, ys = lax.scan(step, jnp.zeros((B, H), jnp.float32),
                      jnp.transpose(x, (1, 0, 2)))
    y = jnp.transpose(ys, (1, 0, 2))        # (B, T, H)
    if keep_dim:
        y = y @ params["fc_w"].T + params["fc_b"]
    return y, hT[None, ...]


def init_params(key, input_size, hidden_size, keep_dim):
    k = 1.0 / jnp.sqrt(hidden_size)
    keys = jax.random.split(key, 6)
    params = {
        "w_ih": jax.random.uniform(keys[0], (3 * hidden_size, input_size),
                                   jnp.float32, -k, k),
        "w_hh": jax.random.uniform(keys[1], (3 * hidden_size, hidden_size),
                                   jnp.float32, -k, k),
        "b_ih": jax.random.uniform(keys[2], (3 * hidden_size,), jnp.float32, -k, k),
        "b_hh": jax.random.uniform(keys[3], (3 * hidden_size,), jnp.float32, -k, k),
    }
    if keep_dim:
        params["fc_w"] = jax.random.uniform(keys[4], (input_size, hidden_size),
                                            jnp.float32, -k, k)
        params["fc_b"] = jax.random.uniform(keys[5], (input_size,),
                                            jnp.float32, -k, k)
    return params


if __name__ == "__main__":
    B, T = 2, 8              # batch, sequence length
    INPUT_SIZE = 16          # GRU input feature size
    HIDDEN_SIZE = 32         # GRU hidden size

    key = jax.random.PRNGKey(0)
    kx, kp = jax.random.split(key)
    x = jax.random.normal(kx, (B, T, INPUT_SIZE), jnp.float32)

    ok = True
    for keep_dim in (False, True):
        params = init_params(kp, INPUT_SIZE, HIDDEN_SIZE, keep_dim)
        y, h = recurrent_block_forward(x, params, keep_dim)
        jax.block_until_ready((y, h))

        y_ref, h_ref = gru_reference(x, params, keep_dim)
        ok &= bool(jnp.allclose(y, y_ref, atol=1e-5, rtol=1e-5))
        ok &= bool(jnp.allclose(h, h_ref, atol=1e-5, rtol=1e-5))

        out_dim = INPUT_SIZE if keep_dim else HIDDEN_SIZE
        assert y.shape == (B, T, out_dim)
        assert h.shape == (1, B, HIDDEN_SIZE)

    print("KERNEL_OK" if ok else "MISMATCH")
</pallas_src>

<mosaic_0001>
module attributes {stable_mosaic.version = 11 : i64} {
  func.func @kernel(%arg0: i32, %arg1: memref<2x8x128xf32, #tpu.memory_space<vmem>>, %arg2: memref<128x384xf32, #tpu.memory_space<vmem>>, %arg3: memref<128x384xf32, #tpu.memory_space<vmem>>, %arg4: memref<1x384xf32, #tpu.memory_space<vmem>>, %arg5: memref<1x384xf32, #tpu.memory_space<vmem>>, %arg6: memref<2x8x128xf32, #tpu.memory_space<vmem>>, %arg7: memref<2x128xf32, #tpu.memory_space<vmem>>, %arg8: memref<2x8x384xf32, #tpu.memory_space<vmem>>, %arg9: memref<2x8x128xf32, #tpu.memory_space<vmem>>) attributes {dimension_semantics = [#tpu.dimension_semantics<parallel>], iteration_bounds = array<i64: 1>, scalar_prefetch = 0 : i64, scratch_operands = 2 : i64, tpu.core_type = #tpu.core_type<tc>, window_params = [{transform_indices = @transform_0, window_bounds = array<i64: 2, 8, 128>}, {pipeline_mode = #tpu.pipeline_mode<synchronous>, transform_indices = @transform_1, window_bounds = array<i64: 128, 384>}, {pipeline_mode = #tpu.pipeline_mode<synchronous>, transform_indices = @transform_2, window_bounds = array<i64: 128, 384>}, {pipeline_mode = #tpu.pipeline_mode<synchronous>, transform_indices = @transform_3, window_bounds = array<i64: 1, 384>}, {pipeline_mode = #tpu.pipeline_mode<synchronous>, transform_indices = @transform_4, window_bounds = array<i64: 1, 384>}, {transform_indices = @transform_5, window_bounds = array<i64: 2, 8, 128>}, {transform_indices = @transform_6, window_bounds = array<i64: 2, 128>}]} {
    %c0 = arith.constant 0 : index
    %c0_0 = arith.constant 0 : index
    %c0_1 = arith.constant 0 : index
    %0 = vector.load %arg1[%c0, %c0_0, %c0_1] : memref<2x8x128xf32, #tpu.memory_space<vmem>>, vector<2x8x128xf32>
    %1 = vector.shape_cast %0 : vector<2x8x128xf32> to vector<16x128xf32>
    %c0_2 = arith.constant 0 : index
    %c0_3 = arith.constant 0 : index
    %2 = vector.load %arg2[%c0_2, %c0_3] : memref<128x384xf32, #tpu.memory_space<vmem>>, vector<128x384xf32>
    %cst = arith.constant dense<0.000000e+00> : vector<16x384xf32>
    %3 = tpu.matmul %1, %2, %cst {dimension_numbers = #tpu.dot_dimension_numbers<[1], [0], [0], [1], [0, 0, 1, 1], [], []>} : vector<16x128xf32>, vector<128x384xf32>, vector<16x384xf32> -> vector<16x384xf32>
    %c0_4 = arith.constant 0 : index
    %c0_5 = arith.constant 0 : index
    %4 = vector.load %arg4[%c0_4, %c0_5] : memref<1x384xf32, #tpu.memory_space<vmem>>, vector<1x384xf32>
    %5 = vector.broadcast %4 : vector<1x384xf32> to vector<16x384xf32>
    %6 = arith.addf %3, %5 : vector<16x384xf32>
    %7 = vector.shape_cast %6 : vector<16x384xf32> to vector<2x8x384xf32>
    %c0_6 = arith.constant 0 : index
    %c0_7 = arith.constant 0 : index
    %c0_8 = arith.constant 0 : index
    %8 = vector.load %arg8[%c0_6, %c0_7, %c0_8] : memref<2x8x384xf32, #tpu.memory_space<vmem>>, vector<2x8x384xf32>
    tpu.vector_store %arg8[%c0_6, %c0_7, %c0_8], %7 {strides = array<i32>} : memref<2x8x384xf32, #tpu.memory_space<vmem>>, vector<2x8x384xf32>,
    %c0_9 = arith.constant 0 : index
    %c0_10 = arith.constant 0 : index
    %9 = vector.load %arg3[%c0_9, %c0_10] : memref<128x384xf32, #tpu.memory_space<vmem>>, vector<128x384xf32>
    %c0_11 = arith.constant 0 : index
    %c0_12 = arith.constant 0 : index
    %10 = vector.load %arg5[%c0_11, %c0_12] : memref<1x384xf32, #tpu.memory_space<vmem>>, vector<1x384xf32>
    %11 = vector.shape_cast %10 : vector<1x384xf32> to vector<1x384xf32>
    %12 = vector.broadcast %11 : vector<1x384xf32> to vector<2x384xf32>
    %cst_13 = arith.constant 0.000000e+00 : f32
    %13 = vector.broadcast %cst_13 : f32 to vector<2x128xf32>
    %c0_14 = arith.constant 0 : index
    %c0_15 = arith.constant 0 : index
    %c0_16 = arith.constant 0 : index
    %14 = vector.load %arg8[%c0_14, %c0_15, %c0_16] : memref<2x8x384xf32, #tpu.memory_space<vmem>>, vector<2x1x384xf32>
    %15 = vector.shape_cast %14 : vector<2x1x384xf32> to vector<2x384xf32>
    %cst_17 = arith.constant dense<0.000000e+00> : vector<2x384xf32>
    %16 = tpu.matmul %13, %9, %cst_17 {dimension_numbers = #tpu.dot_dimension_numbers<[1], [0], [0], [1], [0, 0, 1, 1], [], []>} : vector<2x128xf32>, vector<128x384xf32>, vector<2x384xf32> -> vector<2x384xf32>
    %17 = arith.addf %16, %12 : vector<2x384xf32>
    %18 = vector.extract_strided_slice %15 {offsets = [0, 0], sizes = [2, 128], strides = [1, 1]} : vector<2x384xf32> to vector<2x128xf32>
    %19 = vector.extract_strided_slice %17 {offsets = [0, 0], sizes = [2, 128], strides = [1, 1]} : vector<2x384xf32> to vector<2x128xf32>
    %20 = arith.addf %18, %19 : vector<2x128xf32>
    %21 = arith.negf %20 : vector<2x128xf32>
    %22 = math.exp %21 : vector<2x128xf32>
    %cst_18 = arith.constant 1.000000e+00 : f32
    %23 = vector.broadcast %cst_18 : f32 to vector<2x128xf32>
    %24 = arith.addf %23, %22 : vector<2x128xf32>
    %25 = arith.divf %23, %24 : vector<2x128xf32>
    %26 = vector.extract_strided_slice %15 {offsets = [0, 128], sizes = [2, 128], strides = [1, 1]} : vector<2x384xf32> to vector<2x128xf32>
    %27 = vector.extract_strided_slice %17 {offsets = [0, 128], sizes = [2, 128], strides = [1, 1]} : vector<2x384xf32> to vector<2x128xf32>
    %28 = arith.addf %26, %27 : vector<2x128xf32>
    %29 = arith.negf %28 : vector<2x128xf32>
    %30 = math.exp %29 : vector<2x128xf32>
    %cst_19 = arith.constant 1.000000e+00 : f32
    %31 = vector.broadcast %cst_19 : f32 to vector<2x128xf32>
    %32 = arith.addf %31, %30 : vector<2x128xf32>
    %33 = arith.divf %31, %32 : vector<2x128xf32>
    %34 = vector.extract_strided_slice %15 {offsets = [0, 256], sizes = [2, 128], strides = [1, 1]} : vector<2x384xf32> to vector<2x128xf32>
    %35 = vector.extract_strided_slice %17 {offsets = [0, 256], sizes = [2, 128], strides = [1, 1]} : vector<2x384xf32> to vector<2x128xf32>
    %36 = arith.mulf %25, %35 : vector<2x128xf32>
    %37 = arith.addf %34, %36 : vector<2x128xf32>
    %38 = math.tanh %37 : vector<2x128xf32>
    %cst_20 = arith.constant 1.000000e+00 : f32
    %39 = vector.broadcast %cst_20 : f32 to vector<2x128xf32>
    %40 = arith.subf %39, %33 : vector<2x128xf32>
    %41 = arith.mulf %40, %38 : vector<2x128xf32>
    %42 = arith.mulf %33, %13 : vector<2x128xf32>
    %43 = arith.addf %41, %42 : vector<2x128xf32>
    %44 = vector.shape_cast %43 : vector<2x128xf32> to vector<2x1x128xf32>
    %c0_21 = arith.constant 0 : index
    %c0_22 = arith.constant 0 : index
    %c0_23 = arith.constant 0 : index
    %45 = vector.load %arg9[%c0_21, %c0_22, %c0_23] : memref<2x8x128xf32, #tpu.memory_space<vmem>>, vector<2x1x128xf32>
    tpu.vector_store %arg9[%c0_21, %c0_22, %c0_23], %44 {strides = array<i32>} : memref<2x8x128xf32, #tpu.memory_space<vmem>>, vector<2x1x128xf32>,
    %c0_24 = arith.constant 0 : index
    %c1 = arith.constant 1 : index
    %c0_25 = arith.constant 0 : index
    %46 = vector.load %arg8[%c0_24, %c1, %c0_25] : memref<2x8x384xf32, #tpu.memory_space<vmem>>, vector<2x1x384xf32>
    %47 = vector.shape_cast %46 : vector<2x1x384xf32> to vector<2x384xf32>
    %cst_26 = arith.constant dense<0.000000e+00> : vector<2x384xf32>
    %48 = tpu.matmul %43, %9, %cst_26 {dimension_numbers = #tpu.dot_dimension_numbers<[1], [0], [0], [1], [0, 0, 1, 1], [], []>} : vector<2x128xf32>, vector<128x384xf32>, vector<2x384xf32> -> vector<2x384xf32>
    %49 = arith.addf %48, %12 : vector<2x384xf32>
    %50 = vector.extract_strided_slice %47 {offsets = [0, 0], sizes = [2, 128], strides = [1, 1]} : vector<2x384xf32> to vector<2x128xf32>
    %51 = vector.extract_strided_slice %49 {offsets = [0, 0], sizes = [2, 128], strides = [1, 1]} : vector<2x384xf32> to vector<2x128xf32>
    %52 = arith.addf %50, %51 : vector<2x128xf32>
    %53 = arith.negf %52 : vector<2x128xf32>
    %54 = math.exp %53 : vector<2x128xf32>
    %cst_27 = arith.constant 1.000000e+00 : f32
    %55 = vector.broadcast %cst_27 : f32 to vector<2x128xf32>
    %56 = arith.addf %55, %54 : vector<2x128xf32>
    %57 = arith.divf %55, %56 : vector<2x128xf32>
    %58 = vector.extract_strided_slice %47 {offsets = [0, 128], sizes = [2, 128], strides = [1, 1]} : vector<2x384xf32> to vector<2x128xf32>
    %59 = vector.extract_strided_slice %49 {offsets = [0, 128], sizes = [2, 128], strides = [1, 1]} : vector<2x384xf32> to vector<2x128xf32>
    %60 = arith.addf %58, %59 : vector<2x128xf32>
    %61 = arith.negf %60 : vector<2x128xf32>
    %62 = math.exp %61 : vector<2x128xf32>
    %cst_28 = arith.constant 1.000000e+00 : f32
    %63 = vector.broadcast %cst_28 : f32 to vector<2x128xf32>
    %64 = arith.addf %63, %62 : vector<2x128xf32>
    %65 = arith.divf %63, %64 : vector<2x128xf32>
    %66 = vector.extract_strided_slice %47 {offsets = [0, 256], sizes = [2, 128], strides = [1, 1]} : vector<2x384xf32> to vector<2x128xf32>
    %67 = vector.extract_strided_slice %49 {offsets = [0, 256], sizes = [2, 128], strides = [1, 1]} : vector<2x384xf32> to vector<2x128xf32>
    %68 = arith.mulf %57, %67 : vector<2x128xf32>
    %69 = arith.addf %66, %68 : vector<2x128xf32>
    %70 = math.tanh %69 : vector<2x128xf32>
    %cst_29 = arith.constant 1.000000e+00 : f32
    %71 = vector.broadcast %cst_29 : f32 to vector<2x128xf32>
    %72 = arith.subf %71, %65 : vector<2x128xf32>
    %73 = arith.mulf %72, %70 : vector<2x128xf32>
    %74 = arith.mulf %65, %43 : vector<2x128xf32>
    %75 = arith.addf %73, %74 : vector<2x128xf32>
    %76 = vector.shape_cast %75 : vector<2x128xf32> to vector<2x1x128xf32>
    %c0_30 = arith.constant 0 : index
    %c1_31 = arith.constant 1 : index
    %c0_32 = arith.constant 0 : index
    %77 = vector.load %arg9[%c0_30, %c1_31, %c0_32] : memref<2x8x128xf32, #tpu.memory_space<vmem>>, vector<2x1x128xf32>
    tpu.vector_store %arg9[%c0_30, %c1_31, %c0_32], %76 {strides = array<i32>} : memref<2x8x128xf32, #tpu.memory_space<vmem>>, vector<2x1x128xf32>,
    %c0_33 = arith.constant 0 : index
    %c2 = arith.constant 2 : index
    %c0_34 = arith.constant 0 : index
    %78 = vector.load %arg8[%c0_33, %c2, %c0_34] : memref<2x8x384xf32, #tpu.memory_space<vmem>>, vector<2x1x384xf32>
    %79 = vector.shape_cast %78 : vector<2x1x384xf32> to vector<2x384xf32>
    %cst_35 = arith.constant dense<0.000000e+00> : vector<2x384xf32>
    %80 = tpu.matmul %75, %9, %cst_35 {dimension_numbers = #tpu.dot_dimension_numbers<[1], [0], [0], [1], [0, 0, 1, 1], [], []>} : vector<2x128xf32>, vector<128x384xf32>, vector<2x384xf32> -> vector<2x384xf32>
    %81 = arith.addf %80, %12 : vector<2x384xf32>
    %82 = vector.extract_strided_slice %79 {offsets = [0, 0], sizes = [2, 128], strides = [1, 1]} : vector<2x384xf32> to vector<2x128xf32>
    %83 = vector.extract_strided_slice %81 {offsets = [0, 0], sizes = [2, 128], strides = [1, 1]} : vector<2x384xf32> to vector<2x128xf32>
    %84 = arith.addf %82, %83 : vector<2x128xf32>
    %85 = arith.negf %84 : vector<2x128xf32>
    %86 = math.exp %85 : vector<2x128xf32>
    %cst_36 = arith.constant 1.000000e+00 : f32
    %87 = vector.broadcast %cst_36 : f32 to vector<2x128xf32>
    %88 = arith.addf %87, %86 : vector<2x128xf32>
    %89 = arith.divf %87, %88 : vector<2x128xf32>
    %90 = vector.extract_strided_slice %79 {offsets = [0, 128], sizes = [2, 128], strides = [1, 1]} : vector<2x384xf32> to vector<2x128xf32>
    %91 = vector.extract_strided_slice %81 {offsets = [0, 128], sizes = [2, 128], strides = [1, 1]} : vector<2x384xf32> to vector<2x128xf32>
    %92 = arith.addf %90, %91 : vector<2x128xf32>
    %93 = arith.negf %92 : vector<2x128xf32>
    %94 = math.exp %93 : vector<2x128xf32>
    %cst_37 = arith.constant 1.000000e+00 : f32
    %95 = vector.broadcast %cst_37 : f32 to vector<2x128xf32>
    %96 = arith.addf %95, %94 : vector<2x128xf32>
    %97 = arith.divf %95, %96 : vector<2x128xf32>
    %98 = vector.extract_strided_slice %79 {offsets = [0, 256], sizes = [2, 128], strides = [1, 1]} : vector<2x384xf32> to vector<2x128xf32>
    %99 = vector.extract_strided_slice %81 {offsets = [0, 256], sizes = [2, 128], strides = [1, 1]} : vector<2x384xf32> to vector<2x128xf32>
    %100 = arith.mulf %89, %99 : vector<2x128xf32>
    %101 = arith.addf %98, %100 : vector<2x128xf32>
    %102 = math.tanh %101 : vector<2x128xf32>
    %cst_38 = arith.constant 1.000000e+00 : f32
    %103 = vector.broadcast %cst_38 : f32 to vector<2x128xf32>
    %104 = arith.subf %103, %97 : vector<2x128xf32>
    %105 = arith.mulf %104, %102 : vector<2x128xf32>
    %106 = arith.mulf %97, %75 : vector<2x128xf32>
    %107 = arith.addf %105, %106 : vector<2x128xf32>
    %108 = vector.shape_cast %107 : vector<2x128xf32> to vector<2x1x128xf32>
    %c0_39 = arith.constant 0 : index
    %c2_40 = arith.constant 2 : index
    %c0_41 = arith.constant 0 : index
    %109 = vector.load %arg9[%c0_39, %c2_40, %c0_41] : memref<2x8x128xf32, #tpu.memory_space<vmem>>, vector<2x1x128xf32>
    tpu.vector_store %arg9[%c0_39, %c2_40, %c0_41], %108 {strides = array<i32>} : memref<2x8x128xf32, #tpu.memory_space<vmem>>, vector<2x1x128xf32>,
    %c0_42 = arith.constant 0 : index
    %c3 = arith.constant 3 : index
    %c0_43 = arith.constant 0 : index
    %110 = vector.load %arg8[%c0_42, %c3, %c0_43] : memref<2x8x384xf32, #tpu.memory_space<vmem>>, vector<2x1x384xf32>
    %111 = vector.shape_cast %110 : vector<2x1x384xf32> to vector<2x384xf32>
    %cst_44 = arith.constant dense<0.000000e+00> : vector<2x384xf32>
    %112 = tpu.matmul %107, %9, %cst_44 {dimension_numbers = #tpu.dot_dimension_numbers<[1], [0], [0], [1], [0, 0, 1, 1], [], []>} : vector<2x128xf32>, vector<128x384xf32>, vector<2x384xf32> -> vector<2x384xf32>
    %113 = arith.addf %112, %12 : vector<2x384xf32>
    %114 = vector.extract_strided_slice %111 {offsets = [0, 0], sizes = [2, 128], strides = [1, 1]} : vector<2x384xf32> to vector<2x128xf32>
    %115 = vector.extract_strided_slice %113 {offsets = [0, 0], sizes = [2, 128], strides = [1, 1]} : vector<2x384xf32> to vector<2x128xf32>
    %116 = arith.addf %114, %115 : vector<2x128xf32>
    %117 = arith.negf %116 : vector<2x128xf32>
    %118 = math.exp %117 : vector<2x128xf32>
    %cst_45 = arith.constant 1.000000e+00 : f32
    %119 = vector.broadcast %cst_45 : f32 to vector<2x128xf32>
    %120 = arith.addf %119, %118 : vector<2x128xf32>
    %121 = arith.divf %119, %120 : vector<2x128xf32>
    %122 = vector.extract_strided_slice %111 {offsets = [0, 128], sizes = [2, 128], strides = [1, 1]} : vector<2x384xf32> to vector<2x128xf32>
    %123 = vector.extract_strided_slice %113 {offsets = [0, 128], sizes = [2, 128], strides = [1, 1]} : vector<2x384xf32> to vector<2x128xf32>
    %124 = arith.addf %122, %123 : vector<2x128xf32>
    %125 = arith.negf %124 : vector<2x128xf32>
    %126 = math.exp %125 : vector<2x128xf32>
    %cst_46 = arith.constant 1.000000e+00 : f32
    %127 = vector.broadcast %cst_46 : f32 to vector<2x128xf32>
    %128 = arith.addf %127, %126 : vector<2x128xf32>
    %129 = arith.divf %127, %128 : vector<2x128xf32>
    %130 = vector.extract_strided_slice %111 {offsets = [0, 256], sizes = [2, 128], strides = [1, 1]} : vector<2x384xf32> to vector<2x128xf32>
    %131 = vector.extract_strided_slice %113 {offsets = [0, 256], sizes = [2, 128], strides = [1, 1]} : vector<2x384xf32> to vector<2x128xf32>
    %132 = arith.mulf %121, %131 : vector<2x128xf32>
    %133 = arith.addf %130, %132 : vector<2x128xf32>
    %134 = math.tanh %133 : vector<2x128xf32>
    %cst_47 = arith.constant 1.000000e+00 : f32
    %135 = vector.broadcast %cst_47 : f32 to vector<2x128xf32>
    %136 = arith.subf %135, %129 : vector<2x128xf32>
    %137 = arith.mulf %136, %134 : vector<2x128xf32>
    %138 = arith.mulf %129, %107 : vector<2x128xf32>
    %139 = arith.addf %137, %138 : vector<2x128xf32>
    %140 = vector.shape_cast %139 : vector<2x128xf32> to vector<2x1x128xf32>
    %c0_48 = arith.constant 0 : index
    %c3_49 = arith.constant 3 : index
    %c0_50 = arith.constant 0 : index
    %141 = vector.load %arg9[%c0_48, %c3_49, %c0_50] : memref<2x8x128xf32, #tpu.memory_space<vmem>>, vector<2x1x128xf32>
    tpu.vector_store %arg9[%c0_48, %c3_49, %c0_50], %140 {strides = array<i32>} : memref<2x8x128xf32, #tpu.memory_space<vmem>>, vector<2x1x128xf32>,
    %c0_51 = arith.constant 0 : index
    %c4 = arith.constant 4 : index
    %c0_52 = arith.constant 0 : index
    %142 = vector.load %arg8[%c0_51, %c4, %c0_52] : memref<2x8x384xf32, #tpu.memory_space<vmem>>, vector<2x1x384xf32>
    %143 = vector.shape_cast %142 : vector<2x1x384xf32> to vector<2x384xf32>
    %cst_53 = arith.constant dense<0.000000e+00> : vector<2x384xf32>
    %144 = tpu.matmul %139, %9, %cst_53 {dimension_numbers = #tpu.dot_dimension_numbers<[1], [0], [0], [1], [0, 0, 1, 1], [], []>} : vector<2x128xf32>, vector<128x384xf32>, vector<2x384xf32> -> vector<2x384xf32>
    %145 = arith.addf %144, %12 : vector<2x384xf32>
    %146 = vector.extract_strided_slice %143 {offsets = [0, 0], sizes = [2, 128], strides = [1, 1]} : vector<2x384xf32> to vector<2x128xf32>
    %147 = vector.extract_strided_slice %145 {offsets = [0, 0], sizes = [2, 128], strides = [1, 1]} : vector<2x384xf32> to vector<2x128xf32>
    %148 = arith.addf %146, %147 : vector<2x128xf32>
    %149 = arith.negf %148 : vector<2x128xf32>
    %150 = math.exp %149 : vector<2x128xf32>
    %cst_54 = arith.constant 1.000000e+00 : f32
    %151 = vector.broadcast %cst_54 : f32 to vector<2x128xf32>
    %152 = arith.addf %151, %150 : vector<2x128xf32>
    %153 = arith.divf %151, %152 : vector<2x128xf32>
    %154 = vector.extract_strided_slice %143 {offsets = [0, 128], sizes = [2, 128], strides = [1, 1]} : vector<2x384xf32> to vector<2x128xf32>
    %155 = vector.extract_strided_slice %145 {offsets = [0, 128], sizes = [2, 128], strides = [1, 1]} : vector<2x384xf32> to vector<2x128xf32>
    %156 = arith.addf %154, %155 : vector<2x128xf32>
    %157 = arith.negf %156 : vector<2x128xf32>
    %158 = math.exp %157 : vector<2x128xf32>
    %cst_55 = arith.constant 1.000000e+00 : f32
    %159 = vector.broadcast %cst_55 : f32 to vector<2x128xf32>
    %160 = arith.addf %159, %158 : vector<2x128xf32>
    %161 = arith.divf %159, %160 : vector<2x128xf32>
    %162 = vector.extract_strided_slice %143 {offsets = [0, 256], sizes = [2, 128], strides = [1, 1]} : vector<2x384xf32> to vector<2x128xf32>
    %163 = vector.extract_strided_slice %145 {offsets = [0, 256], sizes = [2, 128], strides = [1, 1]} : vector<2x384xf32> to vector<2x128xf32>
    %164 = arith.mulf %153, %163 : vector<2x128xf32>
    %165 = arith.addf %162, %164 : vector<2x128xf32>
    %166 = math.tanh %165 : vector<2x128xf32>
    %cst_56 = arith.constant 1.000000e+00 : f32
    %167 = vector.broadcast %cst_56 : f32 to vector<2x128xf32>
    %168 = arith.subf %167, %161 : vector<2x128xf32>
    %169 = arith.mulf %168, %166 : vector<2x128xf32>
    %170 = arith.mulf %161, %139 : vector<2x128xf32>
    %171 = arith.addf %169, %170 : vector<2x128xf32>
    %172 = vector.shape_cast %171 : vector<2x128xf32> to vector<2x1x128xf32>
    %c0_57 = arith.constant 0 : index
    %c4_58 = arith.constant 4 : index
    %c0_59 = arith.constant 0 : index
    %173 = vector.load %arg9[%c0_57, %c4_58, %c0_59] : memref<2x8x128xf32, #tpu.memory_space<vmem>>, vector<2x1x128xf32>
    tpu.vector_store %arg9[%c0_57, %c4_58, %c0_59], %172 {strides = array<i32>} : memref<2x8x128xf32, #tpu.memory_space<vmem>>, vector<2x1x128xf32>,
    %c0_60 = arith.constant 0 : index
    %c5 = arith.constant 5 : index
    %c0_61 = arith.constant 0 : index
    %174 = vector.load %arg8[%c0_60, %c5, %c0_61] : memref<2x8x384xf32, #tpu.memory_space<vmem>>, vector<2x1x384xf32>
    %175 = vector.shape_cast %174 : vector<2x1x384xf32> to vector<2x384xf32>
    %cst_62 = arith.constant dense<0.000000e+00> : vector<2x384xf32>
    %176 = tpu.matmul %171, %9, %cst_62 {dimension_numbers = #tpu.dot_dimension_numbers<[1], [0], [0], [1], [0, 0, 1, 1], [], []>} : vector<2x128xf32>, vector<128x384xf32>, vector<2x384xf32> -> vector<2x384xf32>
    %177 = arith.addf %176, %12 : vector<2x384xf32>
    %178 = vector.extract_strided_slice %175 {offsets = [0, 0], sizes = [2, 128], strides = [1, 1]} : vector<2x384xf32> to vector<2x128xf32>
    %179 = vector.extract_strided_slice %177 {offsets = [0, 0], sizes = [2, 128], strides = [1, 1]} : vector<2x384xf32> to vector<2x128xf32>
    %180 = arith.addf %178, %179 : vector<2x128xf32>
    %181 = arith.negf %180 : vector<2x128xf32>
    %182 = math.exp %181 : vector<2x128xf32>
    %cst_63 = arith.constant 1.000000e+00 : f32
    %183 = vector.broadcast %cst_63 : f32 to vector<2x128xf32>
    %184 = arith.addf %183, %182 : vector<2x128xf32>
    %185 = arith.divf %183, %184 : vector<2x128xf32>
    %186 = vector.extract_strided_slice %175 {offsets = [0, 128], sizes = [2, 128], strides = [1, 1]} : vector<2x384xf32> to vector<2x128xf32>
    %187 = vector.extract_strided_slice %177 {offsets = [0, 128], sizes = [2, 128], strides = [1, 1]} : vector<2x384xf32> to vector<2x128xf32>
    %188 = arith.addf %186, %187 : vector<2x128xf32>
    %189 = arith.negf %188 : vector<2x128xf32>
    %190 = math.exp %189 : vector<2x128xf32>
    %cst_64 = arith.constant 1.000000e+00 : f32
    %191 = vector.broadcast %cst_64 : f32 to vector<2x128xf32>
    %192 = arith.addf %191, %190 : vector<2x128xf32>
    %193 = arith.divf %191, %192 : vector<2x128xf32>
    %194 = vector.extract_strided_slice %175 {offsets = [0, 256], sizes = [2, 128], strides = [1, 1]} : vector<2x384xf32> to vector<2x128xf32>
    %195 = vector.extract_strided_slice %177 {offsets = [0, 256], sizes = [2, 128], strides = [1, 1]} : vector<2x384xf32> to vector<2x128xf32>
    %196 = arith.mulf %185, %195 : vector<2x128xf32>
    %197 = arith.addf %194, %196 : vector<2x128xf32>
    %198 = math.tanh %197 : vector<2x128xf32>
    %cst_65 = arith.constant 1.000000e+00 : f32
    %199 = vector.broadcast %cst_65 : f32 to vector<2x128xf32>
    %200 = arith.subf %199, %193 : vector<2x128xf32>
    %201 = arith.mulf %200, %198 : vector<2x128xf32>
    %202 = arith.mulf %193, %171 : vector<2x128xf32>
    %203 = arith.addf %201, %202 : vector<2x128xf32>
    %204 = vector.shape_cast %203 : vector<2x128xf32> to vector<2x1x128xf32>
    %c0_66 = arith.constant 0 : index
    %c5_67 = arith.constant 5 : index
    %c0_68 = arith.constant 0 : index
    %205 = vector.load %arg9[%c0_66, %c5_67, %c0_68] : memref<2x8x128xf32, #tpu.memory_space<vmem>>, vector<2x1x128xf32>
    tpu.vector_store %arg9[%c0_66, %c5_67, %c0_68], %204 {strides = array<i32>} : memref<2x8x128xf32, #tpu.memory_space<vmem>>, vector<2x1x128xf32>,
    %c0_69 = arith.constant 0 : index
    %c6 = arith.constant 6 : index
    %c0_70 = arith.constant 0 : index
    %206 = vector.load %arg8[%c0_69, %c6, %c0_70] : memref<2x8x384xf32, #tpu.memory_space<vmem>>, vector<2x1x384xf32>
    %207 = vector.shape_cast %206 : vector<2x1x384xf32> to vector<2x384xf32>
    %cst_71 = arith.constant dense<0.000000e+00> : vector<2x384xf32>
    %208 = tpu.matmul %203, %9, %cst_71 {dimension_numbers = #tpu.dot_dimension_numbers<[1], [0], [0], [1], [0, 0, 1, 1], [], []>} : vector<2x128xf32>, vector<128x384xf32>, vector<2x384xf32> -> vector<2x384xf32>
    %209 = arith.addf %208, %12 : vector<2x384xf32>
    %210 = vector.extract_strided_slice %207 {offsets = [0, 0], sizes = [2, 128], strides = [1, 1]} : vector<2x384xf32> to vector<2x128xf32>
    %211 = vector.extract_strided_slice %209 {offsets = [0, 0], sizes = [2, 128], strides = [1, 1]} : vector<2x384xf32> to vector<2x128xf32>
    %212 = arith.addf %210, %211 : vector<2x128xf32>
    %213 = arith.negf %212 : vector<2x128xf32>
    %214 = math.exp %213 : vector<2x128xf32>
    %cst_72 = arith.constant 1.000000e+00 : f32
    %215 = vector.broadcast %cst_72 : f32 to vector<2x128xf32>
    %216 = arith.addf %215, %214 : vector<2x128xf32>
    %217 = arith.divf %215, %216 : vector<2x128xf32>
    %218 = vector.extract_strided_slice %207 {offsets = [0, 128], sizes = [2, 128], strides = [1, 1]} : vector<2x384xf32> to vector<2x128xf32>
    %219 = vector.extract_strided_slice %209 {offsets = [0, 128], sizes = [2, 128], strides = [1, 1]} : vector<2x384xf32> to vector<2x128xf32>
    %220 = arith.addf %218, %219 : vector<2x128xf32>
    %221 = arith.negf %220 : vector<2x128xf32>
    %222 = math.exp %221 : vector<2x128xf32>
    %cst_73 = arith.constant 1.000000e+00 : f32
    %223 = vector.broadcast %cst_73 : f32 to vector<2x128xf32>
    %224 = arith.addf %223, %222 : vector<2x128xf32>
    %225 = arith.divf %223, %224 : vector<2x128xf32>
    %226 = vector.extract_strided_slice %207 {offsets = [0, 256], sizes = [2, 128], strides = [1, 1]} : vector<2x384xf32> to vector<2x128xf32>
    %227 = vector.extract_strided_slice %209 {offsets = [0, 256], sizes = [2, 128], strides = [1, 1]} : vector<2x384xf32> to vector<2x128xf32>
    %228 = arith.mulf %217, %227 : vector<2x128xf32>
    %229 = arith.addf %226, %228 : vector<2x128xf32>
    %230 = math.tanh %229 : vector<2x128xf32>
    %cst_74 = arith.constant 1.000000e+00 : f32
    %231 = vector.broadcast %cst_74 : f32 to vector<2x128xf32>
    %232 = arith.subf %231, %225 : vector<2x128xf32>
    %233 = arith.mulf %232, %230 : vector<2x128xf32>
    %234 = arith.mulf %225, %203 : vector<2x128xf32>
    %235 = arith.addf %233, %234 : vector<2x128xf32>
    %236 = vector.shape_cast %235 : vector<2x128xf32> to vector<2x1x128xf32>
    %c0_75 = arith.constant 0 : index
    %c6_76 = arith.constant 6 : index
    %c0_77 = arith.constant 0 : index
    %237 = vector.load %arg9[%c0_75, %c6_76, %c0_77] : memref<2x8x128xf32, #tpu.memory_space<vmem>>, vector<2x1x128xf32>
    tpu.vector_store %arg9[%c0_75, %c6_76, %c0_77], %236 {strides = array<i32>} : memref<2x8x128xf32, #tpu.memory_space<vmem>>, vector<2x1x128xf32>,
    %c0_78 = arith.constant 0 : index
    %c7 = arith.constant 7 : index
    %c0_79 = arith.constant 0 : index
    %238 = vector.load %arg8[%c0_78, %c7, %c0_79] : memref<2x8x384xf32, #tpu.memory_space<vmem>>, vector<2x1x384xf32>
    %239 = vector.shape_cast %238 : vector<2x1x384xf32> to vector<2x384xf32>
    %cst_80 = arith.constant dense<0.000000e+00> : vector<2x384xf32>
    %240 = tpu.matmul %235, %9, %cst_80 {dimension_numbers = #tpu.dot_dimension_numbers<[1], [0], [0], [1], [0, 0, 1, 1], [], []>} : vector<2x128xf32>, vector<128x384xf32>, vector<2x384xf32> -> vector<2x384xf32>
    %241 = arith.addf %240, %12 : vector<2x384xf32>
    %242 = vector.extract_strided_slice %239 {offsets = [0, 0], sizes = [2, 128], strides = [1, 1]} : vector<2x384xf32> to vector<2x128xf32>
    %243 = vector.extract_strided_slice %241 {offsets = [0, 0], sizes = [2, 128], strides = [1, 1]} : vector<2x384xf32> to vector<2x128xf32>
    %244 = arith.addf %242, %243 : vector<2x128xf32>
    %245 = arith.negf %244 : vector<2x128xf32>
    %246 = math.exp %245 : vector<2x128xf32>
    %cst_81 = arith.constant 1.000000e+00 : f32
    %247 = vector.broadcast %cst_81 : f32 to vector<2x128xf32>
    %248 = arith.addf %247, %246 : vector<2x128xf32>
    %249 = arith.divf %247, %248 : vector<2x128xf32>
    %250 = vector.extract_strided_slice %239 {offsets = [0, 128], sizes = [2, 128], strides = [1, 1]} : vector<2x384xf32> to vector<2x128xf32>
    %251 = vector.extract_strided_slice %241 {offsets = [0, 128], sizes = [2, 128], strides = [1, 1]} : vector<2x384xf32> to vector<2x128xf32>
    %252 = arith.addf %250, %251 : vector<2x128xf32>
    %253 = arith.negf %252 : vector<2x128xf32>
    %254 = math.exp %253 : vector<2x128xf32>
    %cst_82 = arith.constant 1.000000e+00 : f32
    %255 = vector.broadcast %cst_82 : f32 to vector<2x128xf32>
    %256 = arith.addf %255, %254 : vector<2x128xf32>
    %257 = arith.divf %255, %256 : vector<2x128xf32>
    %258 = vector.extract_strided_slice %239 {offsets = [0, 256], sizes = [2, 128], strides = [1, 1]} : vector<2x384xf32> to vector<2x128xf32>
    %259 = vector.extract_strided_slice %241 {offsets = [0, 256], sizes = [2, 128], strides = [1, 1]} : vector<2x384xf32> to vector<2x128xf32>
    %260 = arith.mulf %249, %259 : vector<2x128xf32>
    %261 = arith.addf %258, %260 : vector<2x128xf32>
    %262 = math.tanh %261 : vector<2x128xf32>
    %cst_83 = arith.constant 1.000000e+00 : f32
    %263 = vector.broadcast %cst_83 : f32 to vector<2x128xf32>
    %264 = arith.subf %263, %257 : vector<2x128xf32>
    %265 = arith.mulf %264, %262 : vector<2x128xf32>
    %266 = arith.mulf %257, %235 : vector<2x128xf32>
    %267 = arith.addf %265, %266 : vector<2x128xf32>
    %268 = vector.shape_cast %267 : vector<2x128xf32> to vector<2x1x128xf32>
    %c0_84 = arith.constant 0 : index
    %c7_85 = arith.constant 7 : index
    %c0_86 = arith.constant 0 : index
    %269 = vector.load %arg9[%c0_84, %c7_85, %c0_86] : memref<2x8x128xf32, #tpu.memory_space<vmem>>, vector<2x1x128xf32>
    tpu.vector_store %arg9[%c0_84, %c7_85, %c0_86], %268 {strides = array<i32>} : memref<2x8x128xf32, #tpu.memory_space<vmem>>, vector<2x1x128xf32>,
    %c0_87 = arith.constant 0 : index
    %c0_88 = arith.constant 0 : index
    %270 = vector.load %arg7[%c0_87, %c0_88] : memref<2x128xf32, #tpu.memory_space<vmem>>, vector<2x128xf32>
    tpu.vector_store %arg7[%c0_87, %c0_88], %267 {strides = array<i32>} : memref<2x128xf32, #tpu.memory_space<vmem>>, vector<2x128xf32>,
    %c0_89 = arith.constant 0 : index
    %c0_90 = arith.constant 0 : index
    %c0_91 = arith.constant 0 : index
    %271 = vector.load %arg9[%c0_89, %c0_90, %c0_91] : memref<2x8x128xf32, #tpu.memory_space<vmem>>, vector<2x8x128xf32>
    %c0_92 = arith.constant 0 : index
    %c0_93 = arith.constant 0 : index
    %c0_94 = arith.constant 0 : index
    %272 = vector.load %arg6[%c0_92, %c0_93, %c0_94] : memref<2x8x128xf32, #tpu.memory_space<vmem>>, vector<2x8x128xf32>
    tpu.vector_store %arg6[%c0_92, %c0_93, %c0_94], %271 {strides = array<i32>} : memref<2x8x128xf32, #tpu.memory_space<vmem>>, vector<2x8x128xf32>,
    return
  }
  func.func @transform_0(%arg0: i32) -> (i32, i32, i32) {
    %c0_i32 = arith.constant 0 : i32
    %c0_i32_0 = arith.constant 0 : i32
    %c0_i32_1 = arith.constant 0 : i32
    return %arg0, %c0_i32, %c0_i32_0 : i32, i32, i32
  }
  func.func @transform_1(%arg0: i32) -> (i32, i32) {
    %c0_i32 = arith.constant 0 : i32
    %c0_i32_0 = arith.constant 0 : i32
    %c0_i32_1 = arith.constant 0 : i32
    return %c0_i32, %c0_i32_0 : i32, i32
  }
  func.func @transform_2(%arg0: i32) -> (i32, i32) {
    %c0_i32 = arith.constant 0 : i32
    %c0_i32_0 = arith.constant 0 : i32
    %c0_i32_1 = arith.constant 0 : i32
    return %c0_i32, %c0_i32_0 : i32, i32
  }
  func.func @transform_3(%arg0: i32) -> (i32, i32) {
    %c0_i32 = arith.constant 0 : i32
    %c0_i32_0 = arith.constant 0 : i32
    %c0_i32_1 = arith.constant 0 : i32
    return %c0_i32, %c0_i32_0 : i32, i32
  }
  func.func @transform_4(%arg0: i32) -> (i32, i32) {
    %c0_i32 = arith.constant 0 : i32
    %c0_i32_0 = arith.constant 0 : i32
    %c0_i32_1 = arith.constant 0 : i32
    return %c0_i32, %c0_i32_0 : i32, i32
  }
  func.func @transform_5(%arg0: i32) -> (i32, i32, i32) {
    %c0_i32 = arith.constant 0 : i32
    %c0_i32_0 = arith.constant 0 : i32
    %c0_i32_1 = arith.constant 0 : i32
    return %arg0, %c0_i32, %c0_i32_0 : i32, i32, i32
  }
  func.func @transform_6(%arg0: i32) -> (i32, i32) {
    %c0_i32 = arith.constant 0 : i32
    %c0_i32_0 = arith.constant 0 : i32
    return %arg0, %c0_i32 : i32, i32
  }
}

</mosaic_0001>

<llo_original>
// kernel: tpu_custom_call.1
$region0: #{tpu_custom_call.1}
  #allocation0 [shape = 'u32[]', space=smem, size = 0x4, offset = 0x4, fixed_abs, tag = 'smem constant byte address 0x4 - core index']
  #allocation1 [shape = 'u32[144,128]{1,0:T(1,128)}', space=vmem, size = 0x12000, scoped, tag = 'internal scratch']
  #allocation2 [shape = 'f32[2,8,384]{2,1,0:T(8,128)}', space=vmem, size = 0x6000, scoped, tag = 'scratch operand']
  #allocation3 [shape = 'f32[2,8,128]{2,1,0:T(8,128)}', space=vmem, size = 0x2000, scoped, tag = 'scratch operand']
  %s0 = inlined_call_operand.hbm [shape: f32[2,8,128], index: 0, kind: input, shape index: {}]
  %s1 = inlined_call_operand.hbm [shape: f32[128,384], index: 1, kind: input, shape index: {}]
  %s2 = inlined_call_operand.hbm [shape: f32[128,384], index: 2, kind: input, shape index: {}]
  %s3 = inlined_call_operand.vmem [shape: f32[1,384], index: 3, kind: input, shape index: {}]
  %s4 = inlined_call_operand.vmem [shape: f32[1,384], index: 4, kind: input, shape index: {}]
  %s5 = inlined_call_operand.hbm [shape: f32[2,8,128], index: 5, kind: output, shape index: {0}]
  %s6 = inlined_call_operand.hbm [shape: f32[2,128], index: 6, kind: output, shape index: {1}]
  %7 = xla_tuple %s5, %s6
  %s8 = sld [smem:[#allocation0]]
  $region50: #{tpu_custom_call.1} parent=0
    _
  %s10 = ssub.s32 1, %s8
  %s11 = scalar_select 0, %s10, %s8
  $region1: #{tpu_custom_call.1} parent=0
    #allocation4 [shape = 'u8[8192]{0}', space=vmem, size = 0x2000, scoped, tag = 'input window, operand 0, single buffered']
    #allocation5 [shape = 's32[1]{0}', space=sflag, size = 0x4, scoped, tag = 'scoped memory for tpu_custom_call.1']
    #allocation6 [shape = 's32[1]{0}', space=sflag, size = 0x4, scoped, tag = 'scoped memory for tpu_custom_call.1']
    #allocation7 [shape = 'u8[196608]{0}', space=vmem, size = 0x30000, scoped, tag = 'input window, operand 1, single buffered']
    #allocation8 [shape = 's32[1]{0}', space=sflag, size = 0x4, scoped, tag = 'scoped memory for tpu_custom_call.1']
    #allocation9 [shape = 'u8[196608]{0}', space=vmem, size = 0x30000, scoped, tag = 'input window, operand 2, single buffered']
    #allocation10 [shape = 'u8[8192]{0}', space=vmem, size = 0x2000, scoped, tag = 'output window, operand 0, single buffered']
    #allocation11 [shape = 'u8[1024]{0}', space=vmem, size = 0x400, scoped, tag = 'output window, operand 1, single buffered']
    #allocation12 [shape = 's32[1]{0}', space=sflag, size = 0x4, scoped, tag = 'scoped memory for tpu_custom_call.1']
    %12 = vsyncpa [#allocation5], 0
    %13 = vsyncpa [#allocation8], 0
    %14 = vsyncpa [#allocation6], 0
    %15 = vsyncpa [#allocation12], 0
    // Predicated region
    $region2: #{tpu_custom_call.1} parent=1 // pred_check
      _
    $region3: #{tpu_custom_call.1} parent=1 // pred_check_branch
      %17 = sbr.rel (0) target = $region5
    $region4: #{tpu_custom_call.1} parent=1 // pred_region
      %s19 = ssub.s32 256, 256
      %20 = vsyncadd [#allocation5], %s19
      %s21 = sshll.u32 [#allocation4], 4
      %s22 = int_to_ptr.vmem [resolvable:$true] %s21
      %27 = dma.hbm_to_vmem [thread:$0]  %s0, 256, %s22, [#allocation5], 128, 128, 8
    $region5: #{tpu_custom_call.1} parent=1 // pred_fallthru
      _
    // Predicated region
    $region6: #{tpu_custom_call.1} parent=1 // pred_check
      _
    $region7: #{tpu_custom_call.1} parent=1 // pred_check_branch
      %29 = sbr.rel (0) target = $region9
    $region8: #{tpu_custom_call.1} parent=1 // pred_region
      %s31 = ssub.s32 6144, 6144
      %32 = vsyncadd [#allocation8], %s31
      %s33 = sshll.u32 [#allocation7], 4
      %s34 = int_to_ptr.vmem [resolvable:$true] %s33
      %39 = dma.hbm_to_vmem [thread:$0]  %s1, 6144, %s34, [#allocation8], 384, 384, 24
    $region9: #{tpu_custom_call.1} parent=1 // pred_fallthru
      _
    // Predicated region
    $region10: #{tpu_custom_call.1} parent=1 // pred_check
      _
    $region11: #{tpu_custom_call.1} parent=1 // pred_check_branch
      %41 = sbr.rel (0) target = $region13
    $region12: #{tpu_custom_call.1} parent=1 // pred_region
      %s43 = ssub.s32 6144, 6144
      %44 = vsyncadd [#allocation8], %s43
      %s45 = sshll.u32 [#allocation9], 4
      %s46 = int_to_ptr.vmem [resolvable:$true] %s45
      %51 = dma.hbm_to_vmem [thread:$0]  %s2, 6144, %s46, [#allocation8], 384, 384, 24
    $region13: #{tpu_custom_call.1} parent=1 // pred_fallthru
      _
    // Predicated region
    $region14: #{tpu_custom_call.1} parent=1 // pred_check
      _
    $region15: #{tpu_custom_call.1} parent=1 // pred_check_branch
      %53 = sbr.rel (0) target = $region17
    $region16: #{tpu_custom_call.1} parent=1 // pred_region
      _
    $region17: #{tpu_custom_call.1} parent=1 // pred_fallthru
      _
    // Predicated region
    $region18: #{tpu_custom_call.1} parent=1 // pred_check
      _
    $region19: #{tpu_custom_call.1} parent=1 // pred_check_branch
      %55 = sbr.rel (0) target = $region21
    $region20: #{tpu_custom_call.1} parent=1 // pred_region
      _
    $region21: #{tpu_custom_call.1} parent=1 // pred_fallthru
      _
    // Predicated region
    $region22: #{tpu_custom_call.1} parent=1 // pred_check
      _
    $region23: #{tpu_custom_call.1} parent=1 // pred_check_branch
      %57 = sbr.rel (0) target = $region25
    $region24: #{tpu_custom_call.1} parent=1 // pred_region
      %58 = dma.done [#allocation5], 256
    $region25: #{tpu_custom_call.1} parent=1 // pred_fallthru
      _
    // Predicated region
    $region26: #{tpu_custom_call.1} parent=1 // pred_check
      _
    $region27: #{tpu_custom_call.1} parent=1 // pred_check_branch
      %60 = sbr.rel (0) target = $region29
    $region28: #{tpu_custom_call.1} parent=1 // pred_region
      %61 = dma.done [#allocation8], 6144
    $region29: #{tpu_custom_call.1} parent=1 // pred_fallthru
      _
    // Predicated region
    $region30: #{tpu_custom_call.1} parent=1 // pred_check
      _
    $region31: #{tpu_custom_call.1} parent=1 // pred_check_branch
      %63 = sbr.rel (0) target = $region33
    $region32: #{tpu_custom_call.1} parent=1 // pred_region
      %64 = dma.done [#allocation8], 6144
    $region33: #{tpu_custom_call.1} parent=1 // pred_fallthru
      _
    %v65 = vld [vmem:[#allocation4] sm:$0xff]
    %v66 = vld [vmem:[#allocation4 + $0x8] sm:$0xff]
    %v67 = vld [vmem:[#allocation7] sm:$0xff]
    %v68 = vld [vmem:[#allocation7 + $0x8] sm:$0xff]
    %v69 = vld [vmem:[#allocation7 + $0x10] sm:$0xff]
    %v70 = vld [vmem:[#allocation7 + $0x18] sm:$0xff]
    %v71 = vld [vmem:[#allocation7 + $0x20] sm:$0xff]
    %v72 = vld [vmem:[#allocation7 + $0x28] sm:$0xff]
    %v73 = vld [vmem:[#allocation7 + $0x30] sm:$0xff]
    %v74 = vld [vmem:[#allocation7 + $0x38] sm:$0xff]
    %v75 = vld [vmem:[#allocation7 + $0x40] sm:$0xff]
    %v76 = vld [vmem:[#allocation7 + $0x48] sm:$0xff]
    %v77 = vld [vmem:[#allocation7 + $0x50] sm:$0xff]
    %v78 = vld [vmem:[#allocation7 + $0x58] sm:$0xff]
    %v79 = vld [vmem:[#allocation7 + $0x60] sm:$0xff]
    %v80 = vld [vmem:[#allocation7 + $0x68] sm:$0xff]
    %v81 = vld [vmem:[#allocation7 + $0x70] sm:$0xff]
    %v82 = vld [vmem:[#allocation7 + $0x78] sm:$0xff]
    %v83 = vld [vmem:[#allocation7 + $0x80] sm:$0xff]
    %v84 = vld [vmem:[#allocation7 + $0x88] sm:$0xff]
    %v85 = vld [vmem:[#allocation7 + $0x90] sm:$0xff]
    %v86 = vld [vmem:[#allocation7 + $0x98] sm:$0xff]
    %v87 = vld [vmem:[#allocation7 + $0xa0] sm:$0xff]
    %v88 = vld [vmem:[#allocation7 + $0xa8] sm:$0xff]
    %v89 = vld [vmem:[#allocation7 + $0xb0] sm:$0xff]
    %v90 = vld [vmem:[#allocation7 + $0xb8] sm:$0xff]
    %v91 = vld [vmem:[#allocation7 + $0xc0] sm:$0xff]
    %v92 = vld [vmem:[#allocation7 + $0xc8] sm:$0xff]
    %v93 = vld [vmem:[#allocation7 + $0xd0] sm:$0xff]
    %v94 = vld [vmem:[#allocation7 + $0xd8] sm:$0xff]
    %v95 = vld [vmem:[#allocation7 + $0xe0] sm:$0xff]
    %v96 = vld [vmem:[#allocation7 + $0xe8] sm:$0xff]
    %v97 = vld [vmem:[#allocation7 + $0xf0] sm:$0xff]
    %v98 = vld [vmem:[#allocation7 + $0xf8] sm:$0xff]
    %v99 = vld [vmem:[#allocation7 + $0x100] sm:$0xff]
    %v100 = vld [vmem:[#allocation7 + $0x108] sm:$0xff]
    %v101 = vld [vmem:[#allocation7 + $0x110] sm:$0xff]
    %v102 = vld [vmem:[#allocation7 + $0x118] sm:$0xff]
    %v103 = vld [vmem:[#allocation7 + $0x120] sm:$0xff]
    %v104 = vld [vmem:[#allocation7 + $0x128] sm:$0xff]
    %v105 = vld [vmem:[#allocation7 + $0x130] sm:$0xff]
    %v106 = vld [vmem:[#allocation7 + $0x138] sm:$0xff]
    %v107 = vld [vmem:[#allocation7 + $0x140] sm:$0xff]
    %v108 = vld [vmem:[#allocation7 + $0x148] sm:$0xff]
    %v109 = vld [vmem:[#allocation7 + $0x150] sm:$0xff]
    %v110 = vld [vmem:[#allocation7 + $0x158] sm:$0xff]
    %v111 = vld [vmem:[#allocation7 + $0x160] sm:$0xff]
    %v112 = vld [vmem:[#allocation7 + $0x168] sm:$0xff]
    %v113 = vld [vmem:[#allocation7 + $0x170] sm:$0xff]
    %v114 = vld [vmem:[#allocation7 + $0x178] sm:$0xff]
    %v115 = vld [vmem:[%s3] sm:$0x7]
    %v117 = vlaneseq
    %v118 = vshrl.u32 %v117, 7
    %v119 = vsub.s32 0, %v118
    %v120 = vrot.slane %v115, %v119
    %v121 = vlaneseq
    %v122 = vshrl.u32 %v121, 7
    %v123 = vsub.s32 1, %v122
    %v124 = vrot.slane %v115, %v123
    %v125 = vlaneseq
    %v126 = vshrl.u32 %v125, 7
    %v127 = vsub.s32 2, %v126
    %v128 = vrot.slane %v115, %v127
    %132 = vmatprep.subr.mxu0 %v68
    %133 = vmatpush1.msra.mxu0 %v67
    %134 = vmatprep.subr.mxu0 %v71
    %135 = vmatpush1.msra.mxu0 %v70
    %136 = vmatprep.subr.mxu0 %v74
    %137 = vmatpush1.msra.mxu0 %v73
    %138 = vmatprep.subr.mxu0 %v77
    %139 = vmatpush1.msra.mxu0 %v76
    %140 = vmatprep.subr.mxu0 %v80
    %141 = vmatpush1.msra.mxu0 %v79
    %142 = vmatprep.subr.mxu0 %v83
    %143 = vmatpush1.msra.mxu0 %v82
    %144 = vmatprep.subr.mxu0 %v86
    %145 = vmatpush1.msra.mxu0 %v85
    %146 = vmatprep.subr.mxu0 %v89
    %147 = vmatpush1.msra.mxu0 %v88
    %148 = vmatprep.subr.mxu0 %v92
    %149 = vmatpush1.msra.mxu0 %v91
    %150 = vmatprep.subr.mxu0 %v95
    %151 = vmatpush1.msra.mxu0 %v94
    %152 = vmatprep.subr.mxu0 %v98
    %153 = vmatpush1.msra.mxu0 %v97
    %154 = vmatprep.subr.mxu0 %v101
    %155 = vmatpush1.msra.mxu0 %v100
    %156 = vmatprep.subr.mxu0 %v104
    %157 = vmatpush1.msra.mxu0 %v103
    %158 = vmatprep.subr.mxu0 %v107
    %159 = vmatpush1.msra.mxu0 %v106
    %160 = vmatprep.subr.mxu0 %v110
    %161 = vmatpush1.msra.mxu0 %v109
    %162 = vmatprep.subr.mxu0 %v113
    %163 = vmatpush1.msra.mxu0 %v112
    %164 = vmatprep.subr.mxu0 0.0
    %165 = vmatpush1.msra.mxu0 0.0
    %166 = vmatprep.subr.mxu0 0.0
    %167 = vmatpush1.msra.mxu0 0.0
    %168 = vmatprep.subr.mxu0 0.0
    %169 = vmatpush1.msra.mxu0 0.0
    %170 = vmatprep.subr.mxu0 0.0
    %171 = vmatpush1.msra.mxu0 0.0
    %172 = vmatprep.subr.mxu0 0.0
    %173 = vmatpush1.msra.mxu0 0.0
    %174 = vmatprep.subr.mxu0 0.0
    %175 = vmatpush1.msra.mxu0 0.0
    %176 = vmatprep.subr.mxu0 0.0
    %177 = vmatpush1.msra.mxu0 0.0
    %178 = vmatprep.subr.mxu0 0.0
    %179 = vmatpush1.msra.mxu0 0.0
    %180 = vmatprep.subr.mxu0 0.0
    %181 = vmatpush1.msra.mxu0 0.0
    %182 = vmatprep.subr.mxu0 0.0
    %183 = vmatpush1.msra.mxu0 0.0
    %184 = vmatprep.subr.mxu0 0.0
    %185 = vmatpush1.msra.mxu0 0.0
    %186 = vmatprep.subr.mxu0 0.0
    %187 = vmatpush1.msra.mxu0 0.0
    %188 = vmatprep.subr.mxu0 0.0
    %189 = vmatpush1.msra.mxu0 0.0
    %190 = vmatprep.subr.mxu0 0.0
    %191 = vmatpush1.msra.mxu0 0.0
    %192 = vmatprep.subr.mxu0 0.0
    %193 = vmatpush1.msra.mxu0 0.0
    %194 = vmatprep.subr.mxu0 0.0
    %195 = vmatpush1.msra.mxu0 0.0
    %196 = vmatprep.mubr.f32.mxu0 0.0
    %197 = vmatmul.mubr.f32.gmra.mrb[0].mxu0 %v65
    %v198 = vpop.f32.mrb[0].mxu0
    %v199 = vadd.f32 %v120, %v198
    %v200 = vpop.f32.mrb[0].mxu0
    %v201 = vadd.f32 %v124, %v200
    %202 = vmatprep.mubr.f32.mxu0 0.0
    %203 = vmatmul.mubr.f32.gmra.mrb[0].mxu0 %v66
    %v204 = vpop.f32.mrb[0].mxu0
    %v205 = vadd.f32 %v120, %v204
    %v206 = vpop.f32.mrb[0].mxu0
    %v207 = vadd.f32 %v124, %v206
    %208 = vdwg.mxu0
    %209 = vmatprep.subr.mxu0 0.0
    %210 = vmatpush1.msra.mxu0 %v69
    %211 = vmatprep.subr.mxu0 0.0
    %212 = vmatpush1.msra.mxu0 %v72
    %213 = vmatprep.subr.mxu0 0.0
    %214 = vmatpush1.msra.mxu0 %v75
    %215 = vmatprep.subr.mxu0 0.0
    %216 = vmatpush1.msra.mxu0 %v78
    %217 = vmatprep.subr.mxu0 0.0
    %218 = vmatpush1.msra.mxu0 %v81
    %219 = vmatprep.subr.mxu0 0.0
    %220 = vmatpush1.msra.mxu0 %v84
    %221 = vmatprep.subr.mxu0 0.0
    %222 = vmatpush1.msra.mxu0 %v87
    %223 = vmatprep.subr.mxu0 0.0
    %224 = vmatpush1.msra.mxu0 %v90
    %225 = vmatprep.subr.mxu0 0.0
    %226 = vmatpush1.msra.mxu0 %v93
    %227 = vmatprep.subr.mxu0 0.0
    %228 = vmatpush1.msra.mxu0 %v96
    %229 = vmatprep.subr.mxu0 0.0
    %230 = vmatpush1.msra.mxu0 %v99
    %231 = vmatprep.subr.mxu0 0.0
    %232 = vmatpush1.msra.mxu0 %v102
    %233 = vmatprep.subr.mxu0 0.0
    %234 = vmatpush1.msra.mxu0 %v105
    %235 = vmatprep.subr.mxu0 0.0
    %236 = vmatpush1.msra.mxu0 %v108
    %237 = vmatprep.subr.mxu0 0.0
    %238 = vmatpush1.msra.mxu0 %v111
    %239 = vmatprep.subr.mxu0 0.0
    %240 = vmatpush1.msra.mxu0 %v114
    %241 = vmatprep.subr.mxu0 0.0
    %242 = vmatpush1.msra.mxu0 0.0
    %243 = vmatprep.subr.mxu0 0.0
    %244 = vmatpush1.msra.mxu0 0.0
    %245 = vmatprep.subr.mxu0 0.0
    %246 = vmatpush1.msra.mxu0 0.0
    %247 = vmatprep.subr.mxu0 0.0
    %248 = vmatpush1.msra.mxu0 0.0
    %249 = vmatprep.subr.mxu0 0.0
    %250 = vmatpush1.msra.mxu0 0.0
    %251 = vmatprep.subr.mxu0 0.0
    %252 = vmatpush1.msra.mxu0 0.0
    %253 = vmatprep.subr.mxu0 0.0
    %254 = vmatpush1.msra.mxu0 0.0
    %255 = vmatprep.subr.mxu0 0.0
    %256 = vmatpush1.msra.mxu0 0.0
    %257 = vmatprep.subr.mxu0 0.0
    %258 = vmatpush1.msra.mxu0 0.0
    %259 = vmatprep.subr.mxu0 0.0
    %260 = vmatpush1.msra.mxu0 0.0
    %261 = vmatprep.subr.mxu0 0.0
    %262 = vmatpush1.msra.mxu0 0.0
    %263 = vmatprep.subr.mxu0 0.0
    %264 = vmatpush1.msra.mxu0 0.0
    %265 = vmatprep.subr.mxu0 0.0
    %266 = vmatpush1.msra.mxu0 0.0
    %267 = vmatprep.subr.mxu0 0.0
    %268 = vmatpush1.msra.mxu0 0.0
    %269 = vmatprep.subr.mxu0 0.0
    %270 = vmatpush1.msra.mxu0 0.0
    %271 = vmatprep.subr.mxu0 0.0
    %272 = vmatpush1.msra.mxu0 0.0
    %273 = vmatprep.mubr.f32.mxu0 0.0
    %274 = vmatmul.mubr.f32.gmra.mrb[0].mxu0 %v65
    %v275 = vpop.f32.mrb[0].mxu0
    %v276 = vadd.f32 %v128, %v275
    %v277 = vpop.f32.mrb[0].mxu0
    %278 = vmatprep.mubr.f32.mxu0 0.0
    %279 = vmatmul.mubr.f32.gmra.mrb[0].mxu0 %v66
    %v280 = vpop.f32.mrb[0].mxu0
    %v281 = vadd.f32 %v128, %v280
    %v282 = vpop.f32.mrb[0].mxu0
    %283 = vdwg.mxu0
    %284 = vst [vmem:[#allocation2] sm:$0xff] %v199
    %285 = vst [vmem:[#allocation2 + $0x8] sm:$0xff] %v201
    %286 = vst [vmem:[#allocation2 + $0x10] sm:$0xff] %v276
    %287 = vst [vmem:[#allocation2 + $0x18] sm:$0xff] %v205
    %288 = vst [vmem:[#allocation2 + $0x20] sm:$0xff] %v207
    %289 = vst [vmem:[#allocation2 + $0x28] sm:$0xff] %v281
    %v290 = vld [vmem:[#allocation9] sm:$0xff]
    %v291 = vld [vmem:[#allocation9 + $0x8] sm:$0xff]
    %v292 = vld [vmem:[#allocation9 + $0x10] sm:$0xff]
    %v293 = vld [vmem:[#allocation9 + $0x18] sm:$0xff]
    %v294 = vld [vmem:[#allocation9 + $0x20] sm:$0xff]
    %v295 = vld [vmem:[#allocation9 + $0x28] sm:$0xff]
    %v296 = vld [vmem:[#allocation9 + $0x30] sm:$0xff]
    %v297 = vld [vmem:[#allocation9 + $0x38] sm:$0xff]
    %v298 = vld [vmem:[#allocation9 + $0x40] sm:$0xff]
    %v299 = vld [vmem:[#allocation9 + $0x48] sm:$0xff]
    %v300 = vld [vmem:[#allocation9 + $0x50] sm:$0xff]
    %v301 = vld [vmem:[#allocation9 + $0x58] sm:$0xff]
    %v302 = vld [vmem:[#allocation9 + $0x60] sm:$0xff]
    %v303 = vld [vmem:[#allocation9 + $0x68] sm:$0xff]
    %v304 = vld [vmem:[#allocation9 + $0x70] sm:$0xff]
    %v305 = vld [vmem:[#allocation9 + $0x78] sm:$0xff]
    %v306 = vld [vmem:[#allocation9 + $0x80] sm:$0xff]
    %v307 = vld [vmem:[#allocation9 + $0x88] sm:$0xff]
    %v308 = vld [vmem:[#allocation9 + $0x90] sm:$0xff]
    %v309 = vld [vmem:[#allocation9 + $0x98] sm:$0xff]
    %v310 = vld [vmem:[#allocation9 + $0xa0] sm:$0xff]
    %v311 = vld [vmem:[#allocation9 + $0xa8] sm:$0xff]
    %v312 = vld [vmem:[#allocation9 + $0xb0] sm:$0xff]
    %v313 = vld [vmem:[#allocation9 + $0xb8] sm:$0xff]
    %v314 = vld [vmem:[#allocation9 + $0xc0] sm:$0xff]
    %v315 = vld [vmem:[#allocation9 + $0xc8] sm:$0xff]
    %v316 = vld [vmem:[#allocation9 + $0xd0] sm:$0xff]
    %v317 = vld [vmem:[#allocation9 + $0xd8] sm:$0xff]
    %v318 = vld [vmem:[#allocation9 + $0xe0] sm:$0xff]
    %v319 = vld [vmem:[#allocation9 + $0xe8] sm:$0xff]
    %v320 = vld [vmem:[#allocation9 + $0xf0] sm:$0xff]
    %v321 = vld [vmem:[#allocation9 + $0xf8] sm:$0xff]
    %v322 = vld [vmem:[#allocation9 + $0x100] sm:$0xff]
    %v323 = vld [vmem:[#allocation9 + $0x108] sm:$0xff]
    %v324 = vld [vmem:[#allocation9 + $0x110] sm:$0xff]
    %v325 = vld [vmem:[#allocation9 + $0x118] sm:$0xff]
    %v326 = vld [vmem:[#allocation9 + $0x120] sm:$0xff]
    %v327 = vld [vmem:[#allocation9 + $0x128] sm:$0xff]
    %v328 = vld [vmem:[#allocation9 + $0x130] sm:$0xff]
    %v329 = vld [vmem:[#allocation9 + $0x138] sm:$0xff]
    %v330 = vld [vmem:[#allocation9 + $0x140] sm:$0xff]
    %v331 = vld [vmem:[#allocation9 + $0x148] sm:$0xff]
    %v332 = vld [vmem:[#allocation9 + $0x150] sm:$0xff]
    %v333 = vld [vmem:[#allocation9 + $0x158] sm:$0xff]
    %v334 = vld [vmem:[#allocation9 + $0x160] sm:$0xff]
    %v335 = vld [vmem:[#allocation9 + $0x168] sm:$0xff]
    %v336 = vld [vmem:[#allocation9 + $0x170] sm:$0xff]
    %v337 = vld [vmem:[#allocation9 + $0x178] sm:$0xff]
    %v338 = vld [vmem:[%s4] sm:$0x7]
    %v340 = vlaneseq
    %v341 = vshrl.u32 %v340, 7
    %v342 = vsub.s32 0, %v341
    %v343 = vrot.slane %v338, %v342
    %v344 = vlaneseq
    %v345 = vshrl.u32 %v344, 7
    %v346 = vsub.s32 1, %v345
    %v347 = vrot.slane %v338, %v346
    %v348 = vlaneseq
    %v349 = vshrl.u32 %v348, 7
    %v350 = vsub.s32 2, %v349
    %v351 = vrot.slane %v338, %v350
    %v355 = vld [vmem:[#allocation2] ss:$8 sm:$0x7]
    %s356 = scalar_lea.vmem [#allocation2], 24
    %v357 = vld [vmem:[%s356] ss:$8 sm:$0x7]
    %358 = vmatprep.subr.mxu0 %v291
    %359 = vmatpush1.msra.mxu0 %v290
    %360 = vmatprep.subr.mxu0 %v294
    %361 = vmatpush1.msra.mxu0 %v293
    %362 = vmatprep.subr.mxu0 %v297
    %363 = vmatpush1.msra.mxu0 %v296
    %364 = vmatprep.subr.mxu0 %v300
    %365 = vmatpush1.msra.mxu0 %v299
    %366 = vmatprep.subr.mxu0 %v303
    %367 = vmatpush1.msra.mxu0 %v302
    %368 = vmatprep.subr.mxu0 %v306
    %369 = vmatpush1.msra.mxu0 %v305
    %370 = vmatprep.subr.mxu0 %v309
    %371 = vmatpush1.msra.mxu0 %v308
    %372 = vmatprep.subr.mxu0 %v312
    %373 = vmatpush1.msra.mxu0 %v311
    %374 = vmatprep.subr.mxu0 %v315
    %375 = vmatpush1.msra.mxu0 %v314
    %376 = vmatprep.subr.mxu0 %v318
    %377 = vmatpush1.msra.mxu0 %v317
    %378 = vmatprep.subr.mxu0 %v321
    %379 = vmatpush1.msra.mxu0 %v320
    %380 = vmatprep.subr.mxu0 %v324
    %381 = vmatpush1.msra.mxu0 %v323
    %382 = vmatprep.subr.mxu0 %v327
    %383 = vmatpush1.msra.mxu0 %v326
    %384 = vmatprep.subr.mxu0 %v330
    %385 = vmatpush1.msra.mxu0 %v329
    %386 = vmatprep.subr.mxu0 %v333
    %387 = vmatpush1.msra.mxu0 %v332
    %388 = vmatprep.subr.mxu0 %v336
    %389 = vmatpush1.msra.mxu0 %v335
    %390 = vmatprep.subr.mxu0 0.0
    %391 = vmatpush1.msra.mxu0 0.0
    %392 = vmatprep.subr.mxu0 0.0
    %393 = vmatpush1.msra.mxu0 0.0
    %394 = vmatprep.subr.mxu0 0.0
    %395 = vmatpush1.msra.mxu0 0.0
    %396 = vmatprep.subr.mxu0 0.0
    %397 = vmatpush1.msra.mxu0 0.0
    %398 = vmatprep.subr.mxu0 0.0
    %399 = vmatpush1.msra.mxu0 0.0
    %400 = vmatprep.subr.mxu0 0.0
    %401 = vmatpush1.msra.mxu0 0.0
    %402 = vmatprep.subr.mxu0 0.0
    %403 = vmatpush1.msra.mxu0 0.0
    %404 = vmatprep.subr.mxu0 0.0
    %405 = vmatpush1.msra.mxu0 0.0
    %406 = vmatprep.subr.mxu0 0.0
    %407 = vmatpush1.msra.mxu0 0.0
    %408 = vmatprep.subr.mxu0 0.0
    %409 = vmatpush1.msra.mxu0 0.0
    %410 = vmatprep.subr.mxu0 0.0
    %411 = vmatpush1.msra.mxu0 0.0
    %412 = vmatprep.subr.mxu0 0.0
    %413 = vmatpush1.msra.mxu0 0.0
    %414 = vmatprep.subr.mxu0 0.0
    %415 = vmatpush1.msra.mxu0 0.0
    %416 = vmatprep.subr.mxu0 0.0
    %417 = vmatpush1.msra.mxu0 0.0
    %418 = vmatprep.subr.mxu0 0.0
    %419 = vmatpush1.msra.mxu0 0.0
    %420 = vmatprep.subr.mxu0 0.0
    %421 = vmatpush1.msra.mxu0 0.0
    %422 = vmatprep.mubr.f32.mxu0 0.0
    %423 = vmatmul.mubr.f32.gmra.mrb[0].mxu0 0.0
    %v424 = vpop.f32.mrb[0].mxu0
    %v425 = vadd.f32 %v343, %v424
    %v426 = vpop.f32.mrb[0].mxu0
    %v427 = vadd.f32 %v347, %v426
    %428 = vdwg.mxu0
    %429 = vmatprep.subr.mxu0 0.0
    %430 = vmatpush1.msra.mxu0 %v292
    %431 = vmatprep.subr.mxu0 0.0
    %432 = vmatpush1.msra.mxu0 %v295
    %433 = vmatprep.subr.mxu0 0.0
    %434 = vmatpush1.msra.mxu0 %v298
    %435 = vmatprep.subr.mxu0 0.0
    %436 = vmatpush1.msra.mxu0 %v301
    %437 = vmatprep.subr.mxu0 0.0
    %438 = vmatpush1.msra.mxu0 %v304
    %439 = vmatprep.subr.mxu0 0.0
    %440 = vmatpush1.msra.mxu0 %v307
    %441 = vmatprep.subr.mxu0 0.0
    %442 = vmatpush1.msra.mxu0 %v310
    %443 = vmatprep.subr.mxu0 0.0
    %444 = vmatpush1.msra.mxu0 %v313
    %445 = vmatprep.subr.mxu0 0.0
    %446 = vmatpush1.msra.mxu0 %v316
    %447 = vmatprep.subr.mxu0 0.0
    %448 = vmatpush1.msra.mxu0 %v319
    %449 = vmatprep.subr.mxu0 0.0
    %450 = vmatpush1.msra.mxu0 %v322
    %451 = vmatprep.subr.mxu0 0.0
    %452 = vmatpush1.msra.mxu0 %v325
    %453 = vmatprep.subr.mxu0 0.0
    %454 = vmatpush1.msra.mxu0 %v328
    %455 = vmatprep.subr.mxu0 0.0
    %456 = vmatpush1.msra.mxu0 %v331
    %457 = vmatprep.subr.mxu0 0.0
    %458 = vmatpush1.msra.mxu0 %v334
    %459 = vmatprep.subr.mxu0 0.0
    %460 = vmatpush1.msra.mxu0 %v337
    %461 = vmatprep.subr.mxu0 0.0
    %462 = vmatpush1.msra.mxu0 0.0
    %463 = vmatprep.subr.mxu0 0.0
    %464 = vmatpush1.msra.mxu0 0.0
    %465 = vmatprep.subr.mxu0 0.0
    %466 = vmatpush1.msra.mxu0 0.0
    %467 = vmatprep.subr.mxu0 0.0
    %468 = vmatpush1.msra.mxu0 0.0
    %469 = vmatprep.subr.mxu0 0.0
    %470 = vmatpush1.msra.mxu0 0.0
    %471 = vmatprep.subr.mxu0 0.0
    %472 = vmatpush1.msra.mxu0 0.0
    %473 = vmatprep.subr.mxu0 0.0
    %474 = vmatpush1.msra.mxu0 0.0
    %475 = vmatprep.subr.mxu0 0.0
    %476 = vmatpush1.msra.mxu0 0.0
    %477 = vmatprep.subr.mxu0 0.0
    %478 = vmatpush1.msra.mxu0 0.0
    %479 = vmatprep.subr.mxu0 0.0
    %480 = vmatpush1.msra.mxu0 0.0
    %481 = vmatprep.subr.mxu0 0.0
    %482 = vmatpush1.msra.mxu0 0.0
    %483 = vmatprep.subr.mxu0 0.0
    %484 = vmatpush1.msra.mxu0 0.0
    %485 = vmatprep.subr.mxu0 0.0
    %486 = vmatpush1.msra.mxu0 0.0
    %487 = vmatprep.subr.mxu0 0.0
    %488 = vmatpush1.msra.mxu0 0.0
    %489 = vmatprep.subr.mxu0 0.0
    %490 = vmatpush1.msra.mxu0 0.0
    %491 = vmatprep.subr.mxu0 0.0
    %492 = vmatpush1.msra.mxu0 0.0
    %493 = vmatprep.mubr.f32.mxu0 0.0
    %494 = vmatmul.mubr.f32.gmra.mrb[0].mxu0 0.0
    %v495 = vpop.f32.mrb[0].mxu0
    %v496 = vadd.f32 %v351, %v495
    %v497 = vpop.f32.mrb[0].mxu0
    %498 = vdwg.mxu0
    %v501 = vunpack.c.l.s4 1966171168
    %v502 = vunpack.c.0.s8 %v501
    %v503 = vlaneseq
    %v504 = vshrl.u32 %v503, 7
    %v505 = vsub.s32 %v502, %v504
    %v506 = vrot.slane %v425, %v505
    %v507 = vcombine.high %v506, %v506
    %v509 = vunpack.c.l.s4 1966171168
    %v510 = vunpack.c.0.s8 %v509
    %v511 = vlaneseq
    %v512 = vshrl.u32 %v511, 7
    %v513 = vsub.s32 %v510, %v512
    %v514 = vrot.slane %v506, %v513
    %v516 = vunpack.c.l.s4 1966171168
    %v517 = vunpack.c.0.s8 %v516
    %v518 = vlaneseq
    %v519 = vshrl.u32 %v518, 7
    %v520 = vsub.s32 %v517, %v519
    %v521 = vrot.slane %v507, %v520
    %v524 = vadd.f32 %v355, %v514
    %v525 = vadd.f32 %v357, %v521
    %v526 = vxor.u32 %v524, 2147483648
    %v527 = vxor.u32 %v525, 2147483648
    %v528 = vmul.f32 %v526, 1.442695
    %v529 = vpow.pop %v528
    %v530 = vmul.f32 %v527, 1.442695
    %v531 = vpow.pop %v530
    %v532 = vadd.f32 %v529, 1.0
    %v533 = vadd.f32 %v531, 1.0
    %v534 = vrcp.pop %v532
    %v535 = vmul.f32 1.0, %v534
    %v536 = vrcp.pop %v533
    %v537 = vmul.f32 1.0, %v536
    %v540 = vrot.slane %v355, 1
    %v541 = vrot.slane %v357, 1
    %v546 = vunpack.c.l.s4 1966171168
    %v547 = vunpack.c.0.s8 %v546
    %v548 = vlaneseq
    %v549 = vshrl.u32 %v548, 7
    %v550 = vsub.s32 %v547, %v549
    %v551 = vrot.slane %v427, %v550
    %v552 = vcombine.high %v551, %v551
    %v554 = vunpack.c.l.s4 1966171168
    %v555 = vunpack.c.0.s8 %v554
    %v556 = vlaneseq
    %v557 = vshrl.u32 %v556, 7
    %v558 = vsub.s32 %v555, %v557
    %v559 = vrot.slane %v551, %v558
    %v561 = vunpack.c.l.s4 1966171168
    %v562 = vunpack.c.0.s8 %v561
    %v563 = vlaneseq
    %v564 = vshrl.u32 %v563, 7
    %v565 = vsub.s32 %v562, %v564
    %v566 = vrot.slane %v552, %v565
    %v569 = vadd.f32 %v540, %v559
    %v570 = vadd.f32 %v541, %v566
    %v571 = vxor.u32 %v569, 2147483648
    %v572 = vxor.u32 %v570, 2147483648
    %v573 = vmul.f32 %v571, 1.442695
    %v574 = vpow.pop %v573
    %v575 = vmul.f32 %v572, 1.442695
    %v576 = vpow.pop %v575
    %v577 = vadd.f32 %v574, 1.0
    %v578 = vadd.f32 %v576, 1.0
    %v579 = vrcp.pop %v577
    %v580 = vmul.f32 1.0, %v579
    %v581 = vrcp.pop %v578
    %v582 = vmul.f32 1.0, %v581
    %v585 = vunpack.c.l.s4 1966171168
    %v586 = vunpack.c.0.s8 %v585
    %v587 = vlaneseq
    %v588 = vshrl.u32 %v587, 7
    %v589 = vsub.s32 %v586, %v588
    %v590 = vrot.slane %v496, %v589
    %v591 = vcombine.high %v590, %v590
    %v593 = vunpack.c.l.s4 1966171168
    %v594 = vunpack.c.0.s8 %v593
    %v595 = vlaneseq
    %v596 = vshrl.u32 %v595, 7
    %v597 = vsub.s32 %v594, %v596
    %v598 = vrot.slane %v590, %v597
    %v600 = vunpack.c.l.s4 1966171168
    %v601 = vunpack.c.0.s8 %v600
    %v602 = vlaneseq
    %v603 = vshrl.u32 %v602, 7
    %v604 = vsub.s32 %v601, %v603
    %v605 = vrot.slane %v591, %v604
    %v608 = vmul.f32 %v535, %v598
    %v609 = vmul.f32 %v537, %v605
    %v610 = vrot.slane %v355, 2
    %v611 = vrot.slane %v357, 2
    %v614 = vadd.f32 %v610, %v608
    %v615 = vadd.f32 %v611, %v609
    %v616 = vtanh.pop %v614
    %v617 = vtanh.pop %v615
    %v618 = vsub.f32 1.0, %v580
    %v619 = vsub.f32 1.0, %v582
    %v620 = vmul.f32 %v618, %v616
    %v621 = vmul.f32 %v619, %v617
    %v622 = vmul.f32 %v580, 0.0
    %v623 = vmul.f32 %v582, 0.0
    %v624 = vadd.f32 %v620, %v622
    %v625 = vadd.f32 %v621, %v623
    %626 = vst [vmem:[#allocation3] sm:$0x1] %v624
    %627 = vst [vmem:[#allocation3 + $0x8] sm:$0x1] %v625
    %s628 = scalar_lea.vmem [#allocation2], 1
    %v629 = vld [vmem:[%s628] ss:$8 sm:$0x7]
    %s630 = scalar_lea.vmem [#allocation2], 25
    %v631 = vld [vmem:[%s630] ss:$8 sm:$0x7]
    %v634 = vcombine.low %v624, %v625
    %v636 = vunpack.c.l.s4 1966171168
    %v637 = vunpack.c.0.s8 %v636
    %v638 = vlaneseq
    %v639 = vshrl.u32 %v638, 7
    %v640 = vsub.s32 %v637, %v639
    %v641 = vrot.slane %v634, %v640
    %v643 = vunpack.c.l.s4 1966171168
    %v644 = vunpack.c.0.s8 %v643
    %v645 = vlaneseq
    %v646 = vshrl.u32 %v645, 7
    %v647 = vsub.s32 %v644, %v646
    %v648 = vrot.slane %v641, %v647
    %650 = vmatprep.subr.mxu0 %v291
    %651 = vmatpush1.msra.mxu0 %v290
    %652 = vmatprep.subr.mxu0 %v294
    %653 = vmatpush1.msra.mxu0 %v293
    %654 = vmatprep.subr.mxu0 %v297
    %655 = vmatpush1.msra.mxu0 %v296
    %656 = vmatprep.subr.mxu0 %v300
    %657 = vmatpush1.msra.mxu0 %v299
    %658 = vmatprep.subr.mxu0 %v303
    %659 = vmatpush1.msra.mxu0 %v302
    %660 = vmatprep.subr.mxu0 %v306
    %661 = vmatpush1.msra.mxu0 %v305
    %662 = vmatprep.subr.mxu0 %v309
    %663 = vmatpush1.msra.mxu0 %v308
    %664 = vmatprep.subr.mxu0 %v312
    %665 = vmatpush1.msra.mxu0 %v311
    %666 = vmatprep.subr.mxu0 %v315
    %667 = vmatpush1.msra.mxu0 %v314
    %668 = vmatprep.subr.mxu0 %v318
    %669 = vmatpush1.msra.mxu0 %v317
    %670 = vmatprep.subr.mxu0 %v321
    %671 = vmatpush1.msra.mxu0 %v320
    %672 = vmatprep.subr.mxu0 %v324
    %673 = vmatpush1.msra.mxu0 %v323
    %674 = vmatprep.subr.mxu0 %v327
    %675 = vmatpush1.msra.mxu0 %v326
    %676 = vmatprep.subr.mxu0 %v330
    %677 = vmatpush1.msra.mxu0 %v329
    %678 = vmatprep.subr.mxu0 %v333
    %679 = vmatpush1.msra.mxu0 %v332
    %680 = vmatprep.subr.mxu0 %v336
    %681 = vmatpush1.msra.mxu0 %v335
    %682 = vmatprep.subr.mxu0 0.0
    %683 = vmatpush1.msra.mxu0 0.0
    %684 = vmatprep.subr.mxu0 0.0
    %685 = vmatpush1.msra.mxu0 0.0
    %686 = vmatprep.subr.mxu0 0.0
    %687 = vmatpush1.msra.mxu0 0.0
    %688 = vmatprep.subr.mxu0 0.0
    %689 = vmatpush1.msra.mxu0 0.0
    %690 = vmatprep.subr.mxu0 0.0
    %691 = vmatpush1.msra.mxu0 0.0
    %692 = vmatprep.subr.mxu0 0.0
    %693 = vmatpush1.msra.mxu0 0.0
    %694 = vmatprep.subr.mxu0 0.0
    %695 = vmatpush1.msra.mxu0 0.0
    %696 = vmatprep.subr.mxu0 0.0
    %697 = vmatpush1.msra.mxu0 0.0
    %698 = vmatprep.subr.mxu0 0.0
    %699 = vmatpush1.msra.mxu0 0.0
    %700 = vmatprep.subr.mxu0 0.0
    %701 = vmatpush1.msra.mxu0 0.0
    %702 = vmatprep.subr.mxu0 0.0
    %703 = vmatpush1.msra.mxu0 0.0
    %704 = vmatprep.subr.mxu0 0.0
    %705 = vmatpush1.msra.mxu0 0.0
    %706 = vmatprep.subr.mxu0 0.0
    %707 = vmatpush1.msra.mxu0 0.0
    %708 = vmatprep.subr.mxu0 0.0
    %709 = vmatpush1.msra.mxu0 0.0
    %710 = vmatprep.subr.mxu0 0.0
    %711 = vmatpush1.msra.mxu0 0.0
    %712 = vmatprep.subr.mxu0 0.0
    %713 = vmatpush1.msra.mxu0 0.0
    %714 = vmatprep.mubr.f32.mxu0 0.0
    %715 = vmatmul.mubr.f32.gmra.mrb[0].mxu0 %v648
    %v716 = vpop.f32.mrb[0].mxu0
    %v717 = vadd.f32 %v343, %v716
    %v718 = vpop.f32.mrb[0].mxu0
    %v719 = vadd.f32 %v347, %v718
    %720 = vdwg.mxu0
    %721 = vmatprep.subr.mxu0 0.0
    %722 = vmatpush1.msra.mxu0 %v292
    %723 = vmatprep.subr.mxu0 0.0
    %724 = vmatpush1.msra.mxu0 %v295
    %725 = vmatprep.subr.mxu0 0.0
    %726 = vmatpush1.msra.mxu0 %v298
    %727 = vmatprep.subr.mxu0 0.0
    %728 = vmatpush1.msra.mxu0 %v301
    %729 = vmatprep.subr.mxu0 0.0
    %730 = vmatpush1.msra.mxu0 %v304
    %731 = vmatprep.subr.mxu0 0.0
    %732 = vmatpush1.msra.mxu0 %v307
    %733 = vmatprep.subr.mxu0 0.0
    %734 = vmatpush1.msra.mxu0 %v310
    %735 = vmatprep.subr.mxu0 0.0
    %736 = vmatpush1.msra.mxu0 %v313
    %737 = vmatprep.subr.mxu0 0.0
    %738 = vmatpush1.msra.mxu0 %v316
    %739 = vmatprep.subr.mxu0 0.0
    %740 = vmatpush1.msra.mxu0 %v319
    %741 = vmatprep.subr.mxu0 0.0
    %742 = vmatpush1.msra.mxu0 %v322
    %743 = vmatprep.subr.mxu0 0.0
    %744 = vmatpush1.msra.mxu0 %v325
    %745 = vmatprep.subr.mxu0 0.0
    %746 = vmatpush1.msra.mxu0 %v328
    %747 = vmatprep.subr.mxu0 0.0
    %748 = vmatpush1.msra.mxu0 %v331
    %749 = vmatprep.subr.mxu0 0.0
    %750 = vmatpush1.msra.mxu0 %v334
    %751 = vmatprep.subr.mxu0 0.0
    %752 = vmatpush1.msra.mxu0 %v337
    %753 = vmatprep.subr.mxu0 0.0
    %754 = vmatpush1.msra.mxu0 0.0
    %755 = vmatprep.subr.mxu0 0.0
    %756 = vmatpush1.msra.mxu0 0.0
    %757 = vmatprep.subr.mxu0 0.0
    %758 = vmatpush1.msra.mxu0 0.0
    %759 = vmatprep.subr.mxu0 0.0
    %760 = vmatpush1.msra.mxu0 0.0
    %761 = vmatprep.subr.mxu0 0.0
    %762 = vmatpush1.msra.mxu0 0.0
    %763 = vmatprep.subr.mxu0 0.0
    %764 = vmatpush1.msra.mxu0 0.0
    %765 = vmatprep.subr.mxu0 0.0
    %766 = vmatpush1.msra.mxu0 0.0
    %767 = vmatprep.subr.mxu0 0.0
    %768 = vmatpush1.msra.mxu0 0.0
    %769 = vmatprep.subr.mxu0 0.0
    %770 = vmatpush1.msra.mxu0 0.0
    %771 = vmatprep.subr.mxu0 0.0
    %772 = vmatpush1.msra.mxu0 0.0
    %773 = vmatprep.subr.mxu0 0.0
    %774 = vmatpush1.msra.mxu0 0.0
    %775 = vmatprep.subr.mxu0 0.0
    %776 = vmatpush1.msra.mxu0 0.0
    %777 = vmatprep.subr.mxu0 0.0
    %778 = vmatpush1.msra.mxu0 0.0
    %779 = vmatprep.subr.mxu0 0.0
    %780 = vmatpush1.msra.mxu0 0.0
    %781 = vmatprep.subr.mxu0 0.0
    %782 = vmatpush1.msra.mxu0 0.0
    %783 = vmatprep.subr.mxu0 0.0
    %784 = vmatpush1.msra.mxu0 0.0
    %785 = vmatprep.mubr.f32.mxu0 0.0
    %786 = vmatmul.mubr.f32.gmra.mrb[0].mxu0 %v648
    %v787 = vpop.f32.mrb[0].mxu0
    %v788 = vadd.f32 %v351, %v787
    %v789 = vpop.f32.mrb[0].mxu0
    %790 = vdwg.mxu0
    %v793 = vunpack.c.l.s4 1966171168
    %v794 = vunpack.c.0.s8 %v793
    %v795 = vlaneseq
    %v796 = vshrl.u32 %v795, 7
    %v797 = vsub.s32 %v794, %v796
    %v798 = vrot.slane %v717, %v797
    %v799 = vcombine.high %v798, %v798
    %v801 = vunpack.c.l.s4 1966171168
    %v802 = vunpack.c.0.s8 %v801
    %v803 = vlaneseq
    %v804 = vshrl.u32 %v803, 7
    %v805 = vsub.s32 %v802, %v804
    %v806 = vrot.slane %v798, %v805
    %v808 = vunpack.c.l.s4 1966171168
    %v809 = vunpack.c.0.s8 %v808
    %v810 = vlaneseq
    %v811 = vshrl.u32 %v810, 7
    %v812 = vsub.s32 %v809, %v811
    %v813 = vrot.slane %v799, %v812
    %v816 = vadd.f32 %v629, %v806
    %v817 = vadd.f32 %v631, %v813
    %v818 = vxor.u32 %v816, 2147483648
    %v819 = vxor.u32 %v817, 2147483648
    %v820 = vmul.f32 %v818, 1.442695
    %v821 = vpow.pop %v820
    %v822 = vmul.f32 %v819, 1.442695
    %v823 = vpow.pop %v822
    %v824 = vadd.f32 %v821, 1.0
    %v825 = vadd.f32 %v823, 1.0
    %v826 = vrcp.pop %v824
    %v827 = vmul.f32 1.0, %v826
    %v828 = vrcp.pop %v825
    %v829 = vmul.f32 1.0, %v828
    %v832 = vrot.slane %v629, 1
    %v833 = vrot.slane %v631, 1
    %v838 = vunpack.c.l.s4 1966171168
    %v839 = vunpack.c.0.s8 %v838
    %v840 = vlaneseq
    %v841 = vshrl.u32 %v840, 7
    %v842 = vsub.s32 %v839, %v841
    %v843 = vrot.slane %v719, %v842
    %v844 = vcombine.high %v843, %v843
    %v846 = vunpack.c.l.s4 1966171168
    %v847 = vunpack.c.0.s8 %v846
    %v848 = vlaneseq
    %v849 = vshrl.u32 %v848, 7
    %v850 = vsub.s32 %v847, %v849
    %v851 = vrot.slane %v843, %v850
    %v853 = vunpack.c.l.s4 1966171168
    %v854 = vunpack.c.0.s8 %v853
    %v855 = vlaneseq
    %v856 = vshrl.u32 %v855, 7
    %v857 = vsub.s32 %v854, %v856
    %v858 = vrot.slane %v844, %v857
    %v861 = vadd.f32 %v832, %v851
    %v862 = vadd.f32 %v833, %v858
    %v863 = vxor.u32 %v861, 2147483648
    %v864 = vxor.u32 %v862, 2147483648
    %v865 = vmul.f32 %v863, 1.442695
    %v866 = vpow.pop %v865
    %v867 = vmul.f32 %v864, 1.442695
    %v868 = vpow.pop %v867
    %v869 = vadd.f32 %v866, 1.0
    %v870 = vadd.f32 %v868, 1.0
    %v871 = vrcp.pop %v869
    %v872 = vmul.f32 1.0, %v871
    %v873 = vrcp.pop %v870
    %v874 = vmul.f32 1.0, %v873
    %v877 = vunpack.c.l.s4 1966171168
    %v878 = vunpack.c.0.s8 %v877
    %v879 = vlaneseq
    %v880 = vshrl.u32 %v879, 7
    %v881 = vsub.s32 %v878, %v880
    %v882 = vrot.slane %v788, %v881
    %v883 = vcombine.high %v882, %v882
    %v885 = vunpack.c.l.s4 1966171168
    %v886 = vunpack.c.0.s8 %v885
    %v887 = vlaneseq
    %v888 = vshrl.u32 %v887, 7
    %v889 = vsub.s32 %v886, %v888
    %v890 = vrot.slane %v882, %v889
    %v892 = vunpack.c.l.s4 1966171168
    %v893 = vunpack.c.0.s8 %v892
    %v894 = vlaneseq
    %v895 = vshrl.u32 %v894, 7
    %v896 = vsub.s32 %v893, %v895
    %v897 = vrot.slane %v883, %v896
    %v900 = vmul.f32 %v827, %v890
    %v901 = vmul.f32 %v829, %v897
    %v902 = vrot.slane %v629, 2
    %v903 = vrot.slane %v631, 2
    %v906 = vadd.f32 %v902, %v900
    %v907 = vadd.f32 %v903, %v901
    %v908 = vtanh.pop %v906
    %v909 = vtanh.pop %v907
    %v910 = vsub.f32 1.0, %v872
    %v911 = vsub.f32 1.0, %v874
    %v912 = vmul.f32 %v910, %v908
    %v913 = vmul.f32 %v911, %v909
    %v914 = vmul.f32 %v872, %v624
    %v915 = vmul.f32 %v874, %v625
    %v916 = vadd.f32 %v912, %v914
    %v917 = vadd.f32 %v913, %v915
    %918 = vst [vmem:[#allocation3 + $0x1] sm:$0x1] %v916
    %919 = vst [vmem:[#allocation3 + $0x9] sm:$0x1] %v917
    %s920 = scalar_lea.vmem [#allocation2], 2
    %v921 = vld [vmem:[%s920] ss:$8 sm:$0x7]
    %s922 = scalar_lea.vmem [#allocation2], 26
    %v923 = vld [vmem:[%s922] ss:$8 sm:$0x7]
    %v926 = vcombine.low %v916, %v917
    %v928 = vunpack.c.l.s4 1966171168
    %v929 = vunpack.c.0.s8 %v928
    %v930 = vlaneseq
    %v931 = vshrl.u32 %v930, 7
    %v932 = vsub.s32 %v929, %v931
    %v933 = vrot.slane %v926, %v932
    %v935 = vunpack.c.l.s4 1966171168
    %v936 = vunpack.c.0.s8 %v935
    %v937 = vlaneseq
    %v938 = vshrl.u32 %v937, 7
    %v939 = vsub.s32 %v936, %v938
    %v940 = vrot.slane %v933, %v939
    %942 = vmatprep.subr.mxu0 %v291
    %943 = vmatpush1.msra.mxu0 %v290
    %944 = vmatprep.subr.mxu0 %v294
    %945 = vmatpush1.msra.mxu0 %v293
    %946 = vmatprep.subr.mxu0 %v297
    %947 = vmatpush1.msra.mxu0 %v296
    %948 = vmatprep.subr.mxu0 %v300
    %949 = vmatpush1.msra.mxu0 %v299
    %950 = vmatprep.subr.mxu0 %v303
    %951 = vmatpush1.msra.mxu0 %v302
    %952 = vmatprep.subr.mxu0 %v306
    %953 = vmatpush1.msra.mxu0 %v305
    %954 = vmatprep.subr.mxu0 %v309
    %955 = vmatpush1.msra.mxu0 %v308
    %956 = vmatprep.subr.mxu0 %v312
    %957 = vmatpush1.msra.mxu0 %v311
    %958 = vmatprep.subr.mxu0 %v315
    %959 = vmatpush1.msra.mxu0 %v314
    %960 = vmatprep.subr.mxu0 %v318
    %961 = vmatpush1.msra.mxu0 %v317
    %962 = vmatprep.subr.mxu0 %v321
    %963 = vmatpush1.msra.mxu0 %v320
    %964 = vmatprep.subr.mxu0 %v324
    %965 = vmatpush1.msra.mxu0 %v323
    %966 = vmatprep.subr.mxu0 %v327
    %967 = vmatpush1.msra.mxu0 %v326
    %968 = vmatprep.subr.mxu0 %v330
    %969 = vmatpush1.msra.mxu0 %v329
    %970 = vmatprep.subr.mxu0 %v333
    %971 = vmatpush1.msra.mxu0 %v332
    %972 = vmatprep.subr.mxu0 %v336
    %973 = vmatpush1.msra.mxu0 %v335
    %974 = vmatprep.subr.mxu0 0.0
    %975 = vmatpush1.msra.mxu0 0.0
    %976 = vmatprep.subr.mxu0 0.0
    %977 = vmatpush1.msra.mxu0 0.0
    %978 = vmatprep.subr.mxu0 0.0
    %979 = vmatpush1.msra.mxu0 0.0
    %980 = vmatprep.subr.mxu0 0.0
    %981 = vmatpush1.msra.mxu0 0.0
    %982 = vmatprep.subr.mxu0 0.0
    %983 = vmatpush1.msra.mxu0 0.0
    %984 = vmatprep.subr.mxu0 0.0
    %985 = vmatpush1.msra.mxu0 0.0
    %986 = vmatprep.subr.mxu0 0.0
    %987 = vmatpush1.msra.mxu0 0.0
    %988 = vmatprep.subr.mxu0 0.0
    %989 = vmatpush1.msra.mxu0 0.0
    %990 = vmatprep.subr.mxu0 0.0
    %991 = vmatpush1.msra.mxu0 0.0
    %992 = vmatprep.subr.mxu0 0.0
    %993 = vmatpush1.msra.mxu0 0.0
    %994 = vmatprep.subr.mxu0 0.0
    %995 = vmatpush1.msra.mxu0 0.0
    %996 = vmatprep.subr.mxu0 0.0
    %997 = vmatpush1.msra.mxu0 0.0
    %998 = vmatprep.subr.mxu0 0.0
    %999 = vmatpush1.msra.mxu0 0.0
    %1000 = vmatprep.subr.mxu0 0.0
    %1001 = vmatpush1.msra.mxu0 0.0
    %1002 = vmatprep.subr.mxu0 0.0
    %1003 = vmatpush1.msra.mxu0 0.0
    %1004 = vmatprep.subr.mxu0 0.0
    %1005 = vmatpush1.msra.mxu0 0.0
    %1006 = vmatprep.mubr.f32.mxu0 0.0
    %1007 = vmatmul.mubr.f32.gmra.mrb[0].mxu0 %v940
    %v1008 = vpop.f32.mrb[0].mxu0
    %v1009 = vadd.f32 %v343, %v1008
    %v1010 = vpop.f32.mrb[0].mxu0
    %v1011 = vadd.f32 %v347, %v1010
    %1012 = vdwg.mxu0
    %1013 = vmatprep.subr.mxu0 0.0
    %1014 = vmatpush1.msra.mxu0 %v292
    %1015 = vmatprep.subr.mxu0 0.0
    %1016 = vmatpush1.msra.mxu0 %v295
    %1017 = vmatprep.subr.mxu0 0.0
    %1018 = vmatpush1.msra.mxu0 %v298
    %1019 = vmatprep.subr.mxu0 0.0
    %1020 = vmatpush1.msra.mxu0 %v301
    %1021 = vmatprep.subr.mxu0 0.0
    %1022 = vmatpush1.msra.mxu0 %v304
    %1023 = vmatprep.subr.mxu0 0.0
    %1024 = vmatpush1.msra.mxu0 %v307
    %1025 = vmatprep.subr.mxu0 0.0
    %1026 = vmatpush1.msra.mxu0 %v310
    %1027 = vmatprep.subr.mxu0 0.0
    %1028 = vmatpush1.msra.mxu0 %v313
    %1029 = vmatprep.subr.mxu0 0.0
    %1030 = vmatpush1.msra.mxu0 %v316
    %1031 = vmatprep.subr.mxu0 0.0
    %1032 = vmatpush1.msra.mxu0 %v319
    %1033 = vmatprep.subr.mxu0 0.0
    %1034 = vmatpush1.msra.mxu0 %v322
    %1035 = vmatprep.subr.mxu0 0.0
    %1036 = vmatpush1.msra.mxu0 %v325
    %1037 = vmatprep.subr.mxu0 0.0
    %1038 = vmatpush1.msra.mxu0 %v328
    %1039 = vmatprep.subr.mxu0 0.0
    %1040 = vmatpush1.msra.mxu0 %v331
    %1041 = vmatprep.subr.mxu0 0.0
    %1042 = vmatpush1.msra.mxu0 %v334
    %1043 = vmatprep.subr.mxu0 0.0
    %1044 = vmatpush1.msra.mxu0 %v337
    %1045 = vmatprep.subr.mxu0 0.0
    %1046 = vmatpush1.msra.mxu0 0.0
    %1047 = vmatprep.subr.mxu0 0.0
    %1048 = vmatpush1.msra.mxu0 0.0
    %1049 = vmatprep.subr.mxu0 0.0
    %1050 = vmatpush1.msra.mxu0 0.0
    %1051 = vmatprep.subr.mxu0 0.0
    %1052 = vmatpush1.msra.mxu0 0.0
    %1053 = vmatprep.subr.mxu0 0.0
    %1054 = vmatpush1.msra.mxu0 0.0
    %1055 = vmatprep.subr.mxu0 0.0
    %1056 = vmatpush1.msra.mxu0 0.0
    %1057 = vmatprep.subr.mxu0 0.0
    %1058 = vmatpush1.msra.mxu0 0.0
    %1059 = vmatprep.subr.mxu0 0.0
    %1060 = vmatpush1.msra.mxu0 0.0
    %1061 = vmatprep.subr.mxu0 0.0
    %1062 = vmatpush1.msra.mxu0 0.0
    %1063 = vmatprep.subr.mxu0 0.0
    %1064 = vmatpush1.msra.mxu0 0.0
    %1065 = vmatprep.subr.mxu0 0.0
    %1066 = vmatpush1.msra.mxu0 0.0
    %1067 = vmatprep.subr.mxu0 0.0
    %1068 = vmatpush1.msra.mxu0 0.0
    %1069 = vmatprep.subr.mxu0 0.0
    %1070 = vmatpush1.msra.mxu0 0.0
    %1071 = vmatprep.subr.mxu0 0.0
    %1072 = vmatpush1.msra.mxu0 0.0
    %1073 = vmatprep.subr.mxu0 0.0
    %1074 = vmatpush1.msra.mxu0 0.0
    %1075 = vmatprep.subr.mxu0 0.0
    %1076 = vmatpush1.msra.mxu0 0.0
    %1077 = vmatprep.mubr.f32.mxu0 0.0
    %1078 = vmatmul.mubr.f32.gmra.mrb[0].mxu0 %v940
    %v1079 = vpop.f32.mrb[0].mxu0
    %v1080 = vadd.f32 %v351, %v1079
    %v1081 = vpop.f32.mrb[0].mxu0
    %1082 = vdwg.mxu0
    %v1085 = vunpack.c.l.s4 1966171168
    %v1086 = vunpack.c.0.s8 %v1085
    %v1087 = vlaneseq
    %v1088 = vshrl.u32 %v1087, 7
    %v1089 = vsub.s32 %v1086, %v1088
    %v1090 = vrot.slane %v1009, %v1089
    %v1091 = vcombine.high %v1090, %v1090
    %v1093 = vunpack.c.l.s4 1966171168
    %v1094 = vunpack.c.0.s8 %v1093
    %v1095 = vlaneseq
    %v1096 = vshrl.u32 %v1095, 7
    %v1097 = vsub.s32 %v1094, %v1096
    %v1098 = vrot.slane %v1090, %v1097
    %v1100 = vunpack.c.l.s4 1966171168
    %v1101 = vunpack.c.0.s8 %v1100
    %v1102 = vlaneseq
    %v1103 = vshrl.u32 %v1102, 7
    %v1104 = vsub.s32 %v1101, %v1103
    %v1105 = vrot.slane %v1091, %v1104
    %v1108 = vadd.f32 %v921, %v1098
    %v1109 = vadd.f32 %v923, %v1105
    %v1110 = vxor.u32 %v1108, 2147483648
    %v1111 = vxor.u32 %v1109, 2147483648
    %v1112 = vmul.f32 %v1110, 1.442695
    %v1113 = vpow.pop %v1112
    %v1114 = vmul.f32 %v1111, 1.442695
    %v1115 = vpow.pop %v1114
    %v1116 = vadd.f32 %v1113, 1.0
    %v1117 = vadd.f32 %v1115, 1.0
    %v1118 = vrcp.pop %v1116
    %v1119 = vmul.f32 1.0, %v1118
    %v1120 = vrcp.pop %v1117
    %v1121 = vmul.f32 1.0, %v1120
    %v1124 = vrot.slane %v921, 1
    %v1125 = vrot.slane %v923, 1
    %v1130 = vunpack.c.l.s4 1966171168
    %v1131 = vunpack.c.0.s8 %v1130
    %v1132 = vlaneseq
    %v1133 = vshrl.u32 %v1132, 7
    %v1134 = vsub.s32 %v1131, %v1133
    %v1135 = vrot.slane %v1011, %v1134
    %v1136 = vcombine.high %v1135, %v1135
    %v1138 = vunpack.c.l.s4 1966171168
    %v1139 = vunpack.c.0.s8 %v1138
    %v1140 = vlaneseq
    %v1141 = vshrl.u32 %v1140, 7
    %v1142 = vsub.s32 %v1139, %v1141
    %v1143 = vrot.slane %v1135, %v1142
    %v1145 = vunpack.c.l.s4 1966171168
    %v1146 = vunpack.c.0.s8 %v1145
    %v1147 = vlaneseq
    %v1148 = vshrl.u32 %v1147, 7
    %v1149 = vsub.s32 %v1146, %v1148
    %v1150 = vrot.slane %v1136, %v1149
    %v1153 = vadd.f32 %v1124, %v1143
    %v1154 = vadd.f32 %v1125, %v1150
    %v1155 = vxor.u32 %v1153, 2147483648
    %v1156 = vxor.u32 %v1154, 2147483648
    %v1157 = vmul.f32 %v1155, 1.442695
    %v1158 = vpow.pop %v1157
    %v1159 = vmul.f32 %v1156, 1.442695
    %v1160 = vpow.pop %v1159
    %v1161 = vadd.f32 %v1158, 1.0
    %v1162 = vadd.f32 %v1160, 1.0
    %v1163 = vrcp.pop %v1161
    %v1164 = vmul.f32 1.0, %v1163
    %v1165 = vrcp.pop %v1162
    %v1166 = vmul.f32 1.0, %v1165
    %v1169 = vunpack.c.l.s4 1966171168
    %v1170 = vunpack.c.0.s8 %v1169
    %v1171 = vlaneseq
    %v1172 = vshrl.u32 %v1171, 7
    %v1173 = vsub.s32 %v1170, %v1172
    %v1174 = vrot.slane %v1080, %v1173
    %v1175 = vcombine.high %v1174, %v1174
    %v1177 = vunpack.c.l.s4 1966171168
    %v1178 = vunpack.c.0.s8 %v1177
    %v1179 = vlaneseq
    %v1180 = vshrl.u32 %v1179, 7
    %v1181 = vsub.s32 %v1178, %v1180
    %v1182 = vrot.slane %v1174, %v1181
    %v1184 = vunpack.c.l.s4 1966171168
    %v1185 = vunpack.c.0.s8 %v1184
    %v1186 = vlaneseq
    %v1187 = vshrl.u32 %v1186, 7
    %v1188 = vsub.s32 %v1185, %v1187
    %v1189 = vrot.slane %v1175, %v1188
    %v1192 = vmul.f32 %v1119, %v1182
    %v1193 = vmul.f32 %v1121, %v1189
    %v1194 = vrot.slane %v921, 2
    %v1195 = vrot.slane %v923, 2
    %v1198 = vadd.f32 %v1194, %v1192
    %v1199 = vadd.f32 %v1195, %v1193
    %v1200 = vtanh.pop %v1198
    %v1201 = vtanh.pop %v1199
    %v1202 = vsub.f32 1.0, %v1164
    %v1203 = vsub.f32 1.0, %v1166
    %v1204 = vmul.f32 %v1202, %v1200
    %v1205 = vmul.f32 %v1203, %v1201
    %v1206 = vmul.f32 %v1164, %v916
    %v1207 = vmul.f32 %v1166, %v917
    %v1208 = vadd.f32 %v1204, %v1206
    %v1209 = vadd.f32 %v1205, %v1207
    %1210 = vst [vmem:[#allocation3 + $0x2] sm:$0x1] %v1208
    %1211 = vst [vmem:[#allocation3 + $0xa] sm:$0x1] %v1209
    %s1212 = scalar_lea.vmem [#allocation2], 3
    %v1213 = vld [vmem:[%s1212] ss:$8 sm:$0x7]
    %s1214 = scalar_lea.vmem [#allocation2], 27
    %v1215 = vld [vmem:[%s1214] ss:$8 sm:$0x7]
    %v1218 = vcombine.low %v1208, %v1209
    %v1220 = vunpack.c.l.s4 1966171168
    %v1221 = vunpack.c.0.s8 %v1220
    %v1222 = vlaneseq
    %v1223 = vshrl.u32 %v1222, 7
    %v1224 = vsub.s32 %v1221, %v1223
    %v1225 = vrot.slane %v1218, %v1224
    %v1227 = vunpack.c.l.s4 1966171168
    %v1228 = vunpack.c.0.s8 %v1227
    %v1229 = vlaneseq
    %v1230 = vshrl.u32 %v1229, 7
    %v1231 = vsub.s32 %v1228, %v1230
    %v1232 = vrot.slane %v1225, %v1231
    %1234 = vmatprep.subr.mxu0 %v291
    %1235 = vmatpush1.msra.mxu0 %v290
    %1236 = vmatprep.subr.mxu0 %v294
    %1237 = vmatpush1.msra.mxu0 %v293
    %1238 = vmatprep.subr.mxu0 %v297
    %1239 = vmatpush1.msra.mxu0 %v296
    %1240 = vmatprep.subr.mxu0 %v300
    %1241 = vmatpush1.msra.mxu0 %v299
    %1242 = vmatprep.subr.mxu0 %v303
    %1243 = vmatpush1.msra.mxu0 %v302
    %1244 = vmatprep.subr.mxu0 %v306
    %1245 = vmatpush1.msra.mxu0 %v305
    %1246 = vmatprep.subr.mxu0 %v309
    %1247 = vmatpush1.msra.mxu0 %v308
    %1248 = vmatprep.subr.mxu0 %v312
    %1249 = vmatpush1.msra.mxu0 %v311
    %1250 = vmatprep.subr.mxu0 %v315
    %1251 = vmatpush1.msra.mxu0 %v314
    %1252 = vmatprep.subr.mxu0 %v318
    %1253 = vmatpush1.msra.mxu0 %v317
    %1254 = vmatprep.subr.mxu0 %v321
    %1255 = vmatpush1.msra.mxu0 %v320
    %1256 = vmatprep.subr.mxu0 %v324
    %1257 = vmatpush1.msra.mxu0 %v323
    %1258 = vmatprep.subr.mxu0 %v327
    %1259 = vmatpush1.msra.mxu0 %v326
    %1260 = vmatprep.subr.mxu0 %v330
    %1261 = vmatpush1.msra.mxu0 %v329
    %1262 = vmatprep.subr.mxu0 %v333
    %1263 = vmatpush1.msra.mxu0 %v332
    %1264 = vmatprep.subr.mxu0 %v336
    %1265 = vmatpush1.msra.mxu0 %v335
    %1266 = vmatprep.subr.mxu0 0.0
    %1267 = vmatpush1.msra.mxu0 0.0
    %1268 = vmatprep.subr.mxu0 0.0
    %1269 = vmatpush1.msra.mxu0 0.0
    %1270 = vmatprep.subr.mxu0 0.0
    %1271 = vmatpush1.msra.mxu0 0.0
    %1272 = vmatprep.subr.mxu0 0.0
    %1273 = vmatpush1.msra.mxu0 0.0
    %1274 = vmatprep.subr.mxu0 0.0
    %1275 = vmatpush1.msra.mxu0 0.0
    %1276 = vmatprep.subr.mxu0 0.0
    %1277 = vmatpush1.msra.mxu0 0.0
    %1278 = vmatprep.subr.mxu0 0.0
    %1279 = vmatpush1.msra.mxu0 0.0
    %1280 = vmatprep.subr.mxu0 0.0
    %1281 = vmatpush1.msra.mxu0 0.0
    %1282 = vmatprep.subr.mxu0 0.0
    %1283 = vmatpush1.msra.mxu0 0.0
    %1284 = vmatprep.subr.mxu0 0.0
    %1285 = vmatpush1.msra.mxu0 0.0
    %1286 = vmatprep.subr.mxu0 0.0
    %1287 = vmatpush1.msra.mxu0 0.0
    %1288 = vmatprep.subr.mxu0 0.0
    %1289 = vmatpush1.msra.mxu0 0.0
    %1290 = vmatprep.subr.mxu0 0.0
    %1291 = vmatpush1.msra.mxu0 0.0
    %1292 = vmatprep.subr.mxu0 0.0
    %1293 = vmatpush1.msra.mxu0 0.0
    %1294 = vmatprep.subr.mxu0 0.0
    %1295 = vmatpush1.msra.mxu0 0.0
    %1296 = vmatprep.subr.mxu0 0.0
    %1297 = vmatpush1.msra.mxu0 0.0
    %1298 = vmatprep.mubr.f32.mxu0 0.0
    %1299 = vmatmul.mubr.f32.gmra.mrb[0].mxu0 %v1232
    %v1300 = vpop.f32.mrb[0].mxu0
    %v1301 = vadd.f32 %v343, %v1300
    %v1302 = vpop.f32.mrb[0].mxu0
    %v1303 = vadd.f32 %v347, %v1302
    %1304 = vdwg.mxu0
    %1305 = vmatprep.subr.mxu0 0.0
    %1306 = vmatpush1.msra.mxu0 %v292
    %1307 = vmatprep.subr.mxu0 0.0
    %1308 = vmatpush1.msra.mxu0 %v295
    %1309 = vmatprep.subr.mxu0 0.0
    %1310 = vmatpush1.msra.mxu0 %v298
    %1311 = vmatprep.subr.mxu0 0.0
    %1312 = vmatpush1.msra.mxu0 %v301
    %1313 = vmatprep.subr.mxu0 0.0
    %1314 = vmatpush1.msra.mxu0 %v304
    %1315 = vmatprep.subr.mxu0 0.0
    %1316 = vmatpush1.msra.mxu0 %v307
    %1317 = vmatprep.subr.mxu0 0.0
    %1318 = vmatpush1.msra.mxu0 %v310
    %1319 = vmatprep.subr.mxu0 0.0
    %1320 = vmatpush1.msra.mxu0 %v313
    %1321 = vmatprep.subr.mxu0 0.0
    %1322 = vmatpush1.msra.mxu0 %v316
    %1323 = vmatprep.subr.mxu0 0.0
    %1324 = vmatpush1.msra.mxu0 %v319
    %1325 = vmatprep.subr.mxu0 0.0
    %1326 = vmatpush1.msra.mxu0 %v322
    %1327 = vmatprep.subr.mxu0 0.0
    %1328 = vmatpush1.msra.mxu0 %v325
    %1329 = vmatprep.subr.mxu0 0.0
    %1330 = vmatpush1.msra.mxu0 %v328
    %1331 = vmatprep.subr.mxu0 0.0
    %1332 = vmatpush1.msra.mxu0 %v331
    %1333 = vmatprep.subr.mxu0 0.0
    %1334 = vmatpush1.msra.mxu0 %v334
    %1335 = vmatprep.subr.mxu0 0.0
    %1336 = vmatpush1.msra.mxu0 %v337
    %1337 = vmatprep.subr.mxu0 0.0
    %1338 = vmatpush1.msra.mxu0 0.0
    %1339 = vmatprep.subr.mxu0 0.0
    %1340 = vmatpush1.msra.mxu0 0.0
    %1341 = vmatprep.subr.mxu0 0.0
    %1342 = vmatpush1.msra.mxu0 0.0
    %1343 = vmatprep.subr.mxu0 0.0
    %1344 = vmatpush1.msra.mxu0 0.0
    %1345 = vmatprep.subr.mxu0 0.0
    %1346 = vmatpush1.msra.mxu0 0.0
    %1347 = vmatprep.subr.mxu0 0.0
    %1348 = vmatpush1.msra.mxu0 0.0
    %1349 = vmatprep.subr.mxu0 0.0
    %1350 = vmatpush1.msra.mxu0 0.0
    %1351 = vmatprep.subr.mxu0 0.0
    %1352 = vmatpush1.msra.mxu0 0.0
    %1353 = vmatprep.subr.mxu0 0.0
    %1354 = vmatpush1.msra.mxu0 0.0
    %1355 = vmatprep.subr.mxu0 0.0
    %1356 = vmatpush1.msra.mxu0 0.0
    %1357 = vmatprep.subr.mxu0 0.0
    %1358 = vmatpush1.msra.mxu0 0.0
    %1359 = vmatprep.subr.mxu0 0.0
    %1360 = vmatpush1.msra.mxu0 0.0
    %1361 = vmatprep.subr.mxu0 0.0
    %1362 = vmatpush1.msra.mxu0 0.0
    %1363 = vmatprep.subr.mxu0 0.0
    %1364 = vmatpush1.msra.mxu0 0.0
    %1365 = vmatprep.subr.mxu0 0.0
    %1366 = vmatpush1.msra.mxu0 0.0
    %1367 = vmatprep.subr.mxu0 0.0
    %1368 = vmatpush1.msra.mxu0 0.0
    %1369 = vmatprep.mubr.f32.mxu0 0.0
    %1370 = vmatmul.mubr.f32.gmra.mrb[0].mxu0 %v1232
    %v1371 = vpop.f32.mrb[0].mxu0
    %v1372 = vadd.f32 %v351, %v1371
    %v1373 = vpop.f32.mrb[0].mxu0
    %1374 = vdwg.mxu0
    %v1377 = vunpack.c.l.s4 1966171168
    %v1378 = vunpack.c.0.s8 %v1377
    %v1379 = vlaneseq
    %v1380 = vshrl.u32 %v1379, 7
    %v1381 = vsub.s32 %v1378, %v1380
    %v1382 = vrot.slane %v1301, %v1381
    %v1383 = vcombine.high %v1382, %v1382
    %v1385 = vunpack.c.l.s4 1966171168
    %v1386 = vunpack.c.0.s8 %v1385
    %v1387 = vlaneseq
    %v1388 = vshrl.u32 %v1387, 7
    %v1389 = vsub.s32 %v1386, %v1388
    %v1390 = vrot.slane %v1382, %v1389
    %v1392 = vunpack.c.l.s4 1966171168
    %v1393 = vunpack.c.0.s8 %v1392
    %v1394 = vlaneseq
    %v1395 = vshrl.u32 %v1394, 7
    %v1396 = vsub.s32 %v1393, %v1395
    %v1397 = vrot.slane %v1383, %v1396
    %v1400 = vadd.f32 %v1213, %v1390
    %v1401 = vadd.f32 %v1215, %v1397
    %v1402 = vxor.u32 %v1400, 2147483648
    %v1403 = vxor.u32 %v1401, 2147483648
    %v1404 = vmul.f32 %v1402, 1.442695
    %v1405 = vpow.pop %v1404
    %v1406 = vmul.f32 %v1403, 1.442695
    %v1407 = vpow.pop %v1406
    %v1408 = vadd.f32 %v1405, 1.0
    %v1409 = vadd.f32 %v1407, 1.0
    %v1410 = vrcp.pop %v1408
    %v1411 = vmul.f32 1.0, %v1410
    %v1412 = vrcp.pop %v1409
    %v1413 = vmul.f32 1.0, %v1412
    %v1416 = vrot.slane %v1213, 1
    %v1417 = vrot.slane %v1215, 1
    %v1422 = vunpack.c.l.s4 1966171168
    %v1423 = vunpack.c.0.s8 %v1422
    %v1424 = vlaneseq
    %v1425 = vshrl.u32 %v1424, 7
    %v1426 = vsub.s32 %v1423, %v1425
    %v1427 = vrot.slane %v1303, %v1426
    %v1428 = vcombine.high %v1427, %v1427
    %v1430 = vunpack.c.l.s4 1966171168
    %v1431 = vunpack.c.0.s8 %v1430
    %v1432 = vlaneseq
    %v1433 = vshrl.u32 %v1432, 7
    %v1434 = vsub.s32 %v1431, %v1433
    %v1435 = vrot.slane %v1427, %v1434
    %v1437 = vunpack.c.l.s4 1966171168
    %v1438 = vunpack.c.0.s8 %v1437
    %v1439 = vlaneseq
    %v1440 = vshrl.u32 %v1439, 7
    %v1441 = vsub.s32 %v1438, %v1440
    %v1442 = vrot.slane %v1428, %v1441
    %v1445 = vadd.f32 %v1416, %v1435
    %v1446 = vadd.f32 %v1417, %v1442
    %v1447 = vxor.u32 %v1445, 2147483648
    %v1448 = vxor.u32 %v1446, 2147483648
    %v1449 = vmul.f32 %v1447, 1.442695
    %v1450 = vpow.pop %v1449
    %v1451 = vmul.f32 %v1448, 1.442695
    %v1452 = vpow.pop %v1451
    %v1453 = vadd.f32 %v1450, 1.0
    %v1454 = vadd.f32 %v1452, 1.0
    %v1455 = vrcp.pop %v1453
    %v1456 = vmul.f32 1.0, %v1455
    %v1457 = vrcp.pop %v1454
    %v1458 = vmul.f32 1.0, %v1457
    %v1461 = vunpack.c.l.s4 1966171168
    %v1462 = vunpack.c.0.s8 %v1461
    %v1463 = vlaneseq
    %v1464 = vshrl.u32 %v1463, 7
    %v1465 = vsub.s32 %v1462, %v1464
    %v1466 = vrot.slane %v1372, %v1465
    %v1467 = vcombine.high %v1466, %v1466
    %v1469 = vunpack.c.l.s4 1966171168
    %v1470 = vunpack.c.0.s8 %v1469
    %v1471 = vlaneseq
    %v1472 = vshrl.u32 %v1471, 7
    %v1473 = vsub.s32 %v1470, %v1472
    %v1474 = vrot.slane %v1466, %v1473
    %v1476 = vunpack.c.l.s4 1966171168
    %v1477 = vunpack.c.0.s8 %v1476
    %v1478 = vlaneseq
    %v1479 = vshrl.u32 %v1478, 7
    %v1480 = vsub.s32 %v1477, %v1479
    %v1481 = vrot.slane %v1467, %v1480
    %v1484 = vmul.f32 %v1411, %v1474
    %v1485 = vmul.f32 %v1413, %v1481
    %v1486 = vrot.slane %v1213, 2
    %v1487 = vrot.slane %v1215, 2
    %v1490 = vadd.f32 %v1486, %v1484
    %v1491 = vadd.f32 %v1487, %v1485
    %v1492 = vtanh.pop %v1490
    %v1493 = vtanh.pop %v1491
    %v1494 = vsub.f32 1.0, %v1456
    %v1495 = vsub.f32 1.0, %v1458
    %v1496 = vmul.f32 %v1494, %v1492
    %v1497 = vmul.f32 %v1495, %v1493
    %v1498 = vmul.f32 %v1456, %v1208
    %v1499 = vmul.f32 %v1458, %v1209
    %v1500 = vadd.f32 %v1496, %v1498
    %v1501 = vadd.f32 %v1497, %v1499
    %1502 = vst [vmem:[#allocation3 + $0x3] sm:$0x1] %v1500
    %1503 = vst [vmem:[#allocation3 + $0xb] sm:$0x1] %v1501
    %s1504 = scalar_lea.vmem [#allocation2], 4
    %v1505 = vld [vmem:[%s1504] ss:$8 sm:$0x7]
    %s1506 = scalar_lea.vmem [#allocation2], 28
    %v1507 = vld [vmem:[%s1506] ss:$8 sm:$0x7]
    %v1510 = vcombine.low %v1500, %v1501
    %v1512 = vunpack.c.l.s4 1966171168
    %v1513 = vunpack.c.0.s8 %v1512
    %v1514 = vlaneseq
    %v1515 = vshrl.u32 %v1514, 7
    %v1516 = vsub.s32 %v1513, %v1515
    %v1517 = vrot.slane %v1510, %v1516
    %v1519 = vunpack.c.l.s4 1966171168
    %v1520 = vunpack.c.0.s8 %v1519
    %v1521 = vlaneseq
    %v1522 = vshrl.u32 %v1521, 7
    %v1523 = vsub.s32 %v1520, %v1522
    %v1524 = vrot.slane %v1517, %v1523
    %1526 = vmatprep.subr.mxu0 %v291
    %1527 = vmatpush1.msra.mxu0 %v290
    %1528 = vmatprep.subr.mxu0 %v294
    %1529 = vmatpush1.msra.mxu0 %v293
    %1530 = vmatprep.subr.mxu0 %v297
    %1531 = vmatpush1.msra.mxu0 %v296
    %1532 = vmatprep.subr.mxu0 %v300
    %1533 = vmatpush1.msra.mxu0 %v299
    %1534 = vmatprep.subr.mxu0 %v303
    %1535 = vmatpush1.msra.mxu0 %v302
    %1536 = vmatprep.subr.mxu0 %v306
    %1537 = vmatpush1.msra.mxu0 %v305
    %1538 = vmatprep.subr.mxu0 %v309
    %1539 = vmatpush1.msra.mxu0 %v308
    %1540 = vmatprep.subr.mxu0 %v312
    %1541 = vmatpush1.msra.mxu0 %v311
    %1542 = vmatprep.subr.mxu0 %v315
    %1543 = vmatpush1.msra.mxu0 %v314
    %1544 = vmatprep.subr.mxu0 %v318
    %1545 = vmatpush1.msra.mxu0 %v317
    %1546 = vmatprep.subr.mxu0 %v321
    %1547 = vmatpush1.msra.mxu0 %v320
    %1548 = vmatprep.subr.mxu0 %v324
    %1549 = vmatpush1.msra.mxu0 %v323
    %1550 = vmatprep.subr.mxu0 %v327
    %1551 = vmatpush1.msra.mxu0 %v326
    %1552 = vmatprep.subr.mxu0 %v330
    %1553 = vmatpush1.msra.mxu0 %v329
    %1554 = vmatprep.subr.mxu0 %v333
    %1555 = vmatpush1.msra.mxu0 %v332
    %1556 = vmatprep.subr.mxu0 %v336
    %1557 = vmatpush1.msra.mxu0 %v335
    %1558 = vmatprep.subr.mxu0 0.0
    %1559 = vmatpush1.msra.mxu0 0.0
    %1560 = vmatprep.subr.mxu0 0.0
    %1561 = vmatpush1.msra.mxu0 0.0
    %1562 = vmatprep.subr.mxu0 0.0
    %1563 = vmatpush1.msra.mxu0 0.0
    %1564 = vmatprep.subr.mxu0 0.0
    %1565 = vmatpush1.msra.mxu0 0.0
    %1566 = vmatprep.subr.mxu0 0.0
    %1567 = vmatpush1.msra.mxu0 0.0
    %1568 = vmatprep.subr.mxu0 0.0
    %1569 = vmatpush1.msra.mxu0 0.0
    %1570 = vmatprep.subr.mxu0 0.0
    %1571 = vmatpush1.msra.mxu0 0.0
    %1572 = vmatprep.subr.mxu0 0.0
    %1573 = vmatpush1.msra.mxu0 0.0
    %1574 = vmatprep.subr.mxu0 0.0
    %1575 = vmatpush1.msra.mxu0 0.0
    %1576 = vmatprep.subr.mxu0 0.0
    %1577 = vmatpush1.msra.mxu0 0.0
    %1578 = vmatprep.subr.mxu0 0.0
    %1579 = vmatpush1.msra.mxu0 0.0
    %1580 = vmatprep.subr.mxu0 0.0
    %1581 = vmatpush1.msra.mxu0 0.0
    %1582 = vmatprep.subr.mxu0 0.0
    %1583 = vmatpush1.msra.mxu0 0.0
    %1584 = vmatprep.subr.mxu0 0.0
    %1585 = vmatpush1.msra.mxu0 0.0
    %1586 = vmatprep.subr.mxu0 0.0
    %1587 = vmatpush1.msra.mxu0 0.0
    %1588 = vmatprep.subr.mxu0 0.0
    %1589 = vmatpush1.msra.mxu0 0.0
    %1590 = vmatprep.mubr.f32.mxu0 0.0
    %1591 = vmatmul.mubr.f32.gmra.mrb[0].mxu0 %v1524
    %v1592 = vpop.f32.mrb[0].mxu0
    %v1593 = vadd.f32 %v343, %v1592
    %v1594 = vpop.f32.mrb[0].mxu0
    %v1595 = vadd.f32 %v347, %v1594
    %1596 = vdwg.mxu0
    %1597 = vmatprep.subr.mxu0 0.0
    %1598 = vmatpush1.msra.mxu0 %v292
    %1599 = vmatprep.subr.mxu0 0.0
    %1600 = vmatpush1.msra.mxu0 %v295
    %1601 = vmatprep.subr.mxu0 0.0
    %1602 = vmatpush1.msra.mxu0 %v298
    %1603 = vmatprep.subr.mxu0 0.0
    %1604 = vmatpush1.msra.mxu0 %v301
    %1605 = vmatprep.subr.mxu0 0.0
    %1606 = vmatpush1.msra.mxu0 %v304
    %1607 = vmatprep.subr.mxu0 0.0
    %1608 = vmatpush1.msra.mxu0 %v307
    %1609 = vmatprep.subr.mxu0 0.0
    %1610 = vmatpush1.msra.mxu0 %v310
    %1611 = vmatprep.subr.mxu0 0.0
    %1612 = vmatpush1.msra.mxu0 %v313
    %1613 = vmatprep.subr.mxu0 0.0
    %1614 = vmatpush1.msra.mxu0 %v316
    %1615 = vmatprep.subr.mxu0 0.0
    %1616 = vmatpush1.msra.mxu0 %v319
    %1617 = vmatprep.subr.mxu0 0.0
    %1618 = vmatpush1.msra.mxu0 %v322
    %1619 = vmatprep.subr.mxu0 0.0
    %1620 = vmatpush1.msra.mxu0 %v325
    %1621 = vmatprep.subr.mxu0 0.0
    %1622 = vmatpush1.msra.mxu0 %v328
    %1623 = vmatprep.subr.mxu0 0.0
    %1624 = vmatpush1.msra.mxu0 %v331
    %1625 = vmatprep.subr.mxu0 0.0
    %1626 = vmatpush1.msra.mxu0 %v334
    %1627 = vmatprep.subr.mxu0 0.0
    %1628 = vmatpush1.msra.mxu0 %v337
    %1629 = vmatprep.subr.mxu0 0.0
    %1630 = vmatpush1.msra.mxu0 0.0
    %1631 = vmatprep.subr.mxu0 0.0
    %1632 = vmatpush1.msra.mxu0 0.0
    %1633 = vmatprep.subr.mxu0 0.0
    %1634 = vmatpush1.msra.mxu0 0.0
    %1635 = vmatprep.subr.mxu0 0.0
    %1636 = vmatpush1.msra.mxu0 0.0
    %1637 = vmatprep.subr.mxu0 0.0
    %1638 = vmatpush1.msra.mxu0 0.0
    %1639 = vmatprep.subr.mxu0 0.0
    %1640 = vmatpush1.msra.mxu0 0.0
    %1641 = vmatprep.subr.mxu0 0.0
    %1642 = vmatpush1.msra.mxu0 0.0
    %1643 = vmatprep.subr.mxu0 0.0
    %1644 = vmatpush1.msra.mxu0 0.0
    %1645 = vmatprep.subr.mxu0 0.0
    %1646 = vmatpush1.msra.mxu0 0.0
    %1647 = vmatprep.subr.mxu0 0.0
    %1648 = vmatpush1.msra.mxu0 0.0
    %1649 = vmatprep.subr.mxu0 0.0
    %1650 = vmatpush1.msra.mxu0 0.0
    %1651 = vmatprep.subr.mxu0 0.0
    %1652 = vmatpush1.msra.mxu0 0.0
    %1653 = vmatprep.subr.mxu0 0.0
    %1654 = vmatpush1.msra.mxu0 0.0
    %1655 = vmatprep.subr.mxu0 0.0
    %1656 = vmatpush1.msra.mxu0 0.0
    %1657 = vmatprep.subr.mxu0 0.0
    %1658 = vmatpush1.msra.mxu0 0.0
    %1659 = vmatprep.subr.mxu0 0.0
    %1660 = vmatpush1.msra.mxu0 0.0
    %1661 = vmatprep.mubr.f32.mxu0 0.0
    %1662 = vmatmul.mubr.f32.gmra.mrb[0].mxu0 %v1524
    %v1663 = vpop.f32.mrb[0].mxu0
    %v1664 = vadd.f32 %v351, %v1663
    %v1665 = vpop.f32.mrb[0].mxu0
    %1666 = vdwg.mxu0
    %v1669 = vunpack.c.l.s4 1966171168
    %v1670 = vunpack.c.0.s8 %v1669
    %v1671 = vlaneseq
    %v1672 = vshrl.u32 %v1671, 7
    %v1673 = vsub.s32 %v1670, %v1672
    %v1674 = vrot.slane %v1593, %v1673
    %v1675 = vcombine.high %v1674, %v1674
    %v1677 = vunpack.c.l.s4 1966171168
    %v1678 = vunpack.c.0.s8 %v1677
    %v1679 = vlaneseq
    %v1680 = vshrl.u32 %v1679, 7
    %v1681 = vsub.s32 %v1678, %v1680
    %v1682 = vrot.slane %v1674, %v1681
    %v1684 = vunpack.c.l.s4 1966171168
    %v1685 = vunpack.c.0.s8 %v1684
    %v1686 = vlaneseq
    %v1687 = vshrl.u32 %v1686, 7
    %v1688 = vsub.s32 %v1685, %v1687
    %v1689 = vrot.slane %v1675, %v1688
    %v1692 = vadd.f32 %v1505, %v1682
    %v1693 = vadd.f32 %v1507, %v1689
    %v1694 = vxor.u32 %v1692, 2147483648
    %v1695 = vxor.u32 %v1693, 2147483648
    %v1696 = vmul.f32 %v1694, 1.442695
    %v1697 = vpow.pop %v1696
    %v1698 = vmul.f32 %v1695, 1.442695
    %v1699 = vpow.pop %v1698
    %v1700 = vadd.f32 %v1697, 1.0
    %v1701 = vadd.f32 %v1699, 1.0
    %v1702 = vrcp.pop %v1700
    %v1703 = vmul.f32 1.0, %v1702
    %v1704 = vrcp.pop %v1701
    %v1705 = vmul.f32 1.0, %v1704
    %v1708 = vrot.slane %v1505, 1
    %v1709 = vrot.slane %v1507, 1
    %v1714 = vunpack.c.l.s4 1966171168
    %v1715 = vunpack.c.0.s8 %v1714
    %v1716 = vlaneseq
    %v1717 = vshrl.u32 %v1716, 7
    %v1718 = vsub.s32 %v1715, %v1717
    %v1719 = vrot.slane %v1595, %v1718
    %v1720 = vcombine.high %v1719, %v1719
    %v1722 = vunpack.c.l.s4 1966171168
    %v1723 = vunpack.c.0.s8 %v1722
    %v1724 = vlaneseq
    %v1725 = vshrl.u32 %v1724, 7
    %v1726 = vsub.s32 %v1723, %v1725
    %v1727 = vrot.slane %v1719, %v1726
    %v1729 = vunpack.c.l.s4 1966171168
    %v1730 = vunpack.c.0.s8 %v1729
    %v1731 = vlaneseq
    %v1732 = vshrl.u32 %v1731, 7
    %v1733 = vsub.s32 %v1730, %v1732
    %v1734 = vrot.slane %v1720, %v1733
    %v1737 = vadd.f32 %v1708, %v1727
    %v1738 = vadd.f32 %v1709, %v1734
    %v1739 = vxor.u32 %v1737, 2147483648
    %v1740 = vxor.u32 %v1738, 2147483648
    %v1741 = vmul.f32 %v1739, 1.442695
    %v1742 = vpow.pop %v1741
    %v1743 = vmul.f32 %v1740, 1.442695
    %v1744 = vpow.pop %v1743
    %v1745 = vadd.f32 %v1742, 1.0
    %v1746 = vadd.f32 %v1744, 1.0
    %v1747 = vrcp.pop %v1745
    %v1748 = vmul.f32 1.0, %v1747
    %v1749 = vrcp.pop %v1746
    %v1750 = vmul.f32 1.0, %v1749
    %v1753 = vunpack.c.l.s4 1966171168
    %v1754 = vunpack.c.0.s8 %v1753
    %v1755 = vlaneseq
    %v1756 = vshrl.u32 %v1755, 7
    %v1757 = vsub.s32 %v1754, %v1756
    %v1758 = vrot.slane %v1664, %v1757
    %v1759 = vcombine.high %v1758, %v1758
    %v1761 = vunpack.c.l.s4 1966171168
    %v1762 = vunpack.c.0.s8 %v1761
    %v1763 = vlaneseq
    %v1764 = vshrl.u32 %v1763, 7
    %v1765 = vsub.s32 %v1762, %v1764
    %v1766 = vrot.slane %v1758, %v1765
    %v1768 = vunpack.c.l.s4 1966171168
    %v1769 = vunpack.c.0.s8 %v1768
    %v1770 = vlaneseq
    %v1771 = vshrl.u32 %v1770, 7
    %v1772 = vsub.s32 %v1769, %v1771
    %v1773 = vrot.slane %v1759, %v1772
    %v1776 = vmul.f32 %v1703, %v1766
    %v1777 = vmul.f32 %v1705, %v1773
    %v1778 = vrot.slane %v1505, 2
    %v1779 = vrot.slane %v1507, 2
    %v1782 = vadd.f32 %v1778, %v1776
    %v1783 = vadd.f32 %v1779, %v1777
    %v1784 = vtanh.pop %v1782
    %v1785 = vtanh.pop %v1783
    %v1786 = vsub.f32 1.0, %v1748
    %v1787 = vsub.f32 1.0, %v1750
    %v1788 = vmul.f32 %v1786, %v1784
    %v1789 = vmul.f32 %v1787, %v1785
    %v1790 = vmul.f32 %v1748, %v1500
    %v1791 = vmul.f32 %v1750, %v1501
    %v1792 = vadd.f32 %v1788, %v1790
    %v1793 = vadd.f32 %v1789, %v1791
    %1794 = vst [vmem:[#allocation3 + $0x4] sm:$0x1] %v1792
    %1795 = vst [vmem:[#allocation3 + $0xc] sm:$0x1] %v1793
    %s1796 = scalar_lea.vmem [#allocation2], 5
    %v1797 = vld [vmem:[%s1796] ss:$8 sm:$0x7]
    %s1798 = scalar_lea.vmem [#allocation2], 29
    %v1799 = vld [vmem:[%s1798] ss:$8 sm:$0x7]
    %v1802 = vcombine.low %v1792, %v1793
    %v1804 = vunpack.c.l.s4 1966171168
    %v1805 = vunpack.c.0.s8 %v1804
    %v1806 = vlaneseq
    %v1807 = vshrl.u32 %v1806, 7
    %v1808 = vsub.s32 %v1805, %v1807
    %v1809 = vrot.slane %v1802, %v1808
    %v1811 = vunpack.c.l.s4 1966171168
    %v1812 = vunpack.c.0.s8 %v1811
    %v1813 = vlaneseq
    %v1814 = vshrl.u32 %v1813, 7
    %v1815 = vsub.s32 %v1812, %v1814
    %v1816 = vrot.slane %v1809, %v1815
    %1818 = vmatprep.subr.mxu0 %v291
    %1819 = vmatpush1.msra.mxu0 %v290
    %1820 = vmatprep.subr.mxu0 %v294
    %1821 = vmatpush1.msra.mxu0 %v293
    %1822 = vmatprep.subr.mxu0 %v297
    %1823 = vmatpush1.msra.mxu0 %v296
    %1824 = vmatprep.subr.mxu0 %v300
    %1825 = vmatpush1.msra.mxu0 %v299
    %1826 = vmatprep.subr.mxu0 %v303
    %1827 = vmatpush1.msra.mxu0 %v302
    %1828 = vmatprep.subr.mxu0 %v306
    %1829 = vmatpush1.msra.mxu0 %v305
    %1830 = vmatprep.subr.mxu0 %v309
    %1831 = vmatpush1.msra.mxu0 %v308
    %1832 = vmatprep.subr.mxu0 %v312
    %1833 = vmatpush1.msra.mxu0 %v311
    %1834 = vmatprep.subr.mxu0 %v315
    %1835 = vmatpush1.msra.mxu0 %v314
    %1836 = vmatprep.subr.mxu0 %v318
    %1837 = vmatpush1.msra.mxu0 %v317
    %1838 = vmatprep.subr.mxu0 %v321
    %1839 = vmatpush1.msra.mxu0 %v320
    %1840 = vmatprep.subr.mxu0 %v324
    %1841 = vmatpush1.msra.mxu0 %v323
    %1842 = vmatprep.subr.mxu0 %v327
    %1843 = vmatpush1.msra.mxu0 %v326
    %1844 = vmatprep.subr.mxu0 %v330
    %1845 = vmatpush1.msra.mxu0 %v329
    %1846 = vmatprep.subr.mxu0 %v333
    %1847 = vmatpush1.msra.mxu0 %v332
    %1848 = vmatprep.subr.mxu0 %v336
    %1849 = vmatpush1.msra.mxu0 %v335
    %1850 = vmatprep.subr.mxu0 0.0
    %1851 = vmatpush1.msra.mxu0 0.0
    %1852 = vmatprep.subr.mxu0 0.0
    %1853 = vmatpush1.msra.mxu0 0.0
    %1854 = vmatprep.subr.mxu0 0.0
    %1855 = vmatpush1.msra.mxu0 0.0
    %1856 = vmatprep.subr.mxu0 0.0
    %1857 = vmatpush1.msra.mxu0 0.0
    %1858 = vmatprep.subr.mxu0 0.0
    %1859 = vmatpush1.msra.mxu0 0.0
    %1860 = vmatprep.subr.mxu0 0.0
    %1861 = vmatpush1.msra.mxu0 0.0
    %1862 = vmatprep.subr.mxu0 0.0
    %1863 = vmatpush1.msra.mxu0 0.0
    %1864 = vmatprep.subr.mxu0 0.0
    %1865 = vmatpush1.msra.mxu0 0.0
    %1866 = vmatprep.subr.mxu0 0.0
    %1867 = vmatpush1.msra.mxu0 0.0
    %1868 = vmatprep.subr.mxu0 0.0
    %1869 = vmatpush1.msra.mxu0 0.0
    %1870 = vmatprep.subr.mxu0 0.0
    %1871 = vmatpush1.msra.mxu0 0.0
    %1872 = vmatprep.subr.mxu0 0.0
    %1873 = vmatpush1.msra.mxu0 0.0
    %1874 = vmatprep.subr.mxu0 0.0
    %1875 = vmatpush1.msra.mxu0 0.0
    %1876 = vmatprep.subr.mxu0 0.0
    %1877 = vmatpush1.msra.mxu0 0.0
    %1878 = vmatprep.subr.mxu0 0.0
    %1879 = vmatpush1.msra.mxu0 0.0
    %1880 = vmatprep.subr.mxu0 0.0
    %1881 = vmatpush1.msra.mxu0 0.0
    %1882 = vmatprep.mubr.f32.mxu0 0.0
    %1883 = vmatmul.mubr.f32.gmra.mrb[0].mxu0 %v1816
    %v1884 = vpop.f32.mrb[0].mxu0
    %v1885 = vadd.f32 %v343, %v1884
    %v1886 = vpop.f32.mrb[0].mxu0
    %v1887 = vadd.f32 %v347, %v1886
    %1888 = vdwg.mxu0
    %1889 = vmatprep.subr.mxu0 0.0
    %1890 = vmatpush1.msra.mxu0 %v292
    %1891 = vmatprep.subr.mxu0 0.0
    %1892 = vmatpush1.msra.mxu0 %v295
    %1893 = vmatprep.subr.mxu0 0.0
    %1894 = vmatpush1.msra.mxu0 %v298
    %1895 = vmatprep.subr.mxu0 0.0
    %1896 = vmatpush1.msra.mxu0 %v301
    %1897 = vmatprep.subr.mxu0 0.0
    %1898 = vmatpush1.msra.mxu0 %v304
    %1899 = vmatprep.subr.mxu0 0.0
    %1900 = vmatpush1.msra.mxu0 %v307
    %1901 = vmatprep.subr.mxu0 0.0
    %1902 = vmatpush1.msra.mxu0 %v310
    %1903 = vmatprep.subr.mxu0 0.0
    %1904 = vmatpush1.msra.mxu0 %v313
    %1905 = vmatprep.subr.mxu0 0.0
    %1906 = vmatpush1.msra.mxu0 %v316
    %1907 = vmatprep.subr.mxu0 0.0
    %1908 = vmatpush1.msra.mxu0 %v319
    %1909 = vmatprep.subr.mxu0 0.0
    %1910 = vmatpush1.msra.mxu0 %v322
    %1911 = vmatprep.subr.mxu0 0.0
    %1912 = vmatpush1.msra.mxu0 %v325
    %1913 = vmatprep.subr.mxu0 0.0
    %1914 = vmatpush1.msra.mxu0 %v328
    %1915 = vmatprep.subr.mxu0 0.0
    %1916 = vmatpush1.msra.mxu0 %v331
    %1917 = vmatprep.subr.mxu0 0.0
    %1918 = vmatpush1.msra.mxu0 %v334
    %1919 = vmatprep.subr.mxu0 0.0
    %1920 = vmatpush1.msra.mxu0 %v337
    %1921 = vmatprep.subr.mxu0 0.0
    %1922 = vmatpush1.msra.mxu0 0.0
    %1923 = vmatprep.subr.mxu0 0.0
    %1924 = vmatpush1.msra.mxu0 0.0
    %1925 = vmatprep.subr.mxu0 0.0
    %1926 = vmatpush1.msra.mxu0 0.0
    %1927 = vmatprep.subr.mxu0 0.0
    %1928 = vmatpush1.msra.mxu0 0.0
    %1929 = vmatprep.subr.mxu0 0.0
    %1930 = vmatpush1.msra.mxu0 0.0
    %1931 = vmatprep.subr.mxu0 0.0
    %1932 = vmatpush1.msra.mxu0 0.0
    %1933 = vmatprep.subr.mxu0 0.0
    %1934 = vmatpush1.msra.mxu0 0.0
    %1935 = vmatprep.subr.mxu0 0.0
    %1936 = vmatpush1.msra.mxu0 0.0
    %1937 = vmatprep.subr.mxu0 0.0
    %1938 = vmatpush1.msra.mxu0 0.0
    %1939 = vmatprep.subr.mxu0 0.0
    %1940 = vmatpush1.msra.mxu0 0.0
    %1941 = vmatprep.subr.mxu0 0.0
    %1942 = vmatpush1.msra.mxu0 0.0
    %1943 = vmatprep.subr.mxu0 0.0
    %1944 = vmatpush1.msra.mxu0 0.0
    %1945 = vmatprep.subr.mxu0 0.0
    %1946 = vmatpush1.msra.mxu0 0.0
    %1947 = vmatprep.subr.mxu0 0.0
    %1948 = vmatpush1.msra.mxu0 0.0
    %1949 = vmatprep.subr.mxu0 0.0
    %1950 = vmatpush1.msra.mxu0 0.0
    %1951 = vmatprep.subr.mxu0 0.0
    %1952 = vmatpush1.msra.mxu0 0.0
    %1953 = vmatprep.mubr.f32.mxu0 0.0
    %1954 = vmatmul.mubr.f32.gmra.mrb[0].mxu0 %v1816
    %v1955 = vpop.f32.mrb[0].mxu0
    %v1956 = vadd.f32 %v351, %v1955
    %v1957 = vpop.f32.mrb[0].mxu0
    %1958 = vdwg.mxu0
    %v1961 = vunpack.c.l.s4 1966171168
    %v1962 = vunpack.c.0.s8 %v1961
    %v1963 = vlaneseq
    %v1964 = vshrl.u32 %v1963, 7
    %v1965 = vsub.s32 %v1962, %v1964
    %v1966 = vrot.slane %v1885, %v1965
    %v1967 = vcombine.high %v1966, %v1966
    %v1969 = vunpack.c.l.s4 1966171168
    %v1970 = vunpack.c.0.s8 %v1969
    %v1971 = vlaneseq
    %v1972 = vshrl.u32 %v1971, 7
    %v1973 = vsub.s32 %v1970, %v1972
    %v1974 = vrot.slane %v1966, %v1973
    %v1976 = vunpack.c.l.s4 1966171168
    %v1977 = vunpack.c.0.s8 %v1976
    %v1978 = vlaneseq
    %v1979 = vshrl.u32 %v1978, 7
    %v1980 = vsub.s32 %v1977, %v1979
    %v1981 = vrot.slane %v1967, %v1980
    %v1984 = vadd.f32 %v1797, %v1974
    %v1985 = vadd.f32 %v1799, %v1981
    %v1986 = vxor.u32 %v1984, 2147483648
    %v1987 = vxor.u32 %v1985, 2147483648
    %v1988 = vmul.f32 %v1986, 1.442695
    %v1989 = vpow.pop %v1988
    %v1990 = vmul.f32 %v1987, 1.442695
    %v1991 = vpow.pop %v1990
    %v1992 = vadd.f32 %v1989, 1.0
    %v1993 = vadd.f32 %v1991, 1.0
    %v1994 = vrcp.pop %v1992
    %v1995 = vmul.f32 1.0, %v1994
    %v1996 = vrcp.pop %v1993
    %v1997 = vmul.f32 1.0, %v1996
    %v2000 = vrot.slane %v1797, 1
    %v2001 = vrot.slane %v1799, 1
    %v2006 = vunpack.c.l.s4 1966171168
    %v2007 = vunpack.c.0.s8 %v2006
    %v2008 = vlaneseq
    %v2009 = vshrl.u32 %v2008, 7
    %v2010 = vsub.s32 %v2007, %v2009
    %v2011 = vrot.slane %v1887, %v2010
    %v2012 = vcombine.high %v2011, %v2011
    %v2014 = vunpack.c.l.s4 1966171168
    %v2015 = vunpack.c.0.s8 %v2014
    %v2016 = vlaneseq
    %v2017 = vshrl.u32 %v2016, 7
    %v2018 = vsub.s32 %v2015, %v2017
    %v2019 = vrot.slane %v2011, %v2018
    %v2021 = vunpack.c.l.s4 1966171168
    %v2022 = vunpack.c.0.s8 %v2021
    %v2023 = vlaneseq
    %v2024 = vshrl.u32 %v2023, 7
    %v2025 = vsub.s32 %v2022, %v2024
    %v2026 = vrot.slane %v2012, %v2025
    %v2029 = vadd.f32 %v2000, %v2019
    %v2030 = vadd.f32 %v2001, %v2026
    %v2031 = vxor.u32 %v2029, 2147483648
    %v2032 = vxor.u32 %v2030, 2147483648
    %v2033 = vmul.f32 %v2031, 1.442695
    %v2034 = vpow.pop %v2033
    %v2035 = vmul.f32 %v2032, 1.442695
    %v2036 = vpow.pop %v2035
    %v2037 = vadd.f32 %v2034, 1.0
    %v2038 = vadd.f32 %v2036, 1.0
    %v2039 = vrcp.pop %v2037
    %v2040 = vmul.f32 1.0, %v2039
    %v2041 = vrcp.pop %v2038
    %v2042 = vmul.f32 1.0, %v2041
    %v2045 = vunpack.c.l.s4 1966171168
    %v2046 = vunpack.c.0.s8 %v2045
    %v2047 = vlaneseq
    %v2048 = vshrl.u32 %v2047, 7
    %v2049 = vsub.s32 %v2046, %v2048
    %v2050 = vrot.slane %v1956, %v2049
    %v2051 = vcombine.high %v2050, %v2050
    %v2053 = vunpack.c.l.s4 1966171168
    %v2054 = vunpack.c.0.s8 %v2053
    %v2055 = vlaneseq
    %v2056 = vshrl.u32 %v2055, 7
    %v2057 = vsub.s32 %v2054, %v2056
    %v2058 = vrot.slane %v2050, %v2057
    %v2060 = vunpack.c.l.s4 1966171168
    %v2061 = vunpack.c.0.s8 %v2060
    %v2062 = vlaneseq
    %v2063 = vshrl.u32 %v2062, 7
    %v2064 = vsub.s32 %v2061, %v2063
    %v2065 = vrot.slane %v2051, %v2064
    %v2068 = vmul.f32 %v1995, %v2058
    %v2069 = vmul.f32 %v1997, %v2065
    %v2070 = vrot.slane %v1797, 2
    %v2071 = vrot.slane %v1799, 2
    %v2074 = vadd.f32 %v2070, %v2068
    %v2075 = vadd.f32 %v2071, %v2069
    %v2076 = vtanh.pop %v2074
    %v2077 = vtanh.pop %v2075
    %v2078 = vsub.f32 1.0, %v2040
    %v2079 = vsub.f32 1.0, %v2042
    %v2080 = vmul.f32 %v2078, %v2076
    %v2081 = vmul.f32 %v2079, %v2077
    %v2082 = vmul.f32 %v2040, %v1792
    %v2083 = vmul.f32 %v2042, %v1793
    %v2084 = vadd.f32 %v2080, %v2082
    %v2085 = vadd.f32 %v2081, %v2083
    %2086 = vst [vmem:[#allocation3 + $0x5] sm:$0x1] %v2084
    %2087 = vst [vmem:[#allocation3 + $0xd] sm:$0x1] %v2085
    %s2088 = scalar_lea.vmem [#allocation2], 6
    %v2089 = vld [vmem:[%s2088] ss:$8 sm:$0x7]
    %s2090 = scalar_lea.vmem [#allocation2], 30
    %v2091 = vld [vmem:[%s2090] ss:$8 sm:$0x7]
    %v2094 = vcombine.low %v2084, %v2085
    %v2096 = vunpack.c.l.s4 1966171168
    %v2097 = vunpack.c.0.s8 %v2096
    %v2098 = vlaneseq
    %v2099 = vshrl.u32 %v2098, 7
    %v2100 = vsub.s32 %v2097, %v2099
    %v2101 = vrot.slane %v2094, %v2100
    %v2103 = vunpack.c.l.s4 1966171168
    %v2104 = vunpack.c.0.s8 %v2103
    %v2105 = vlaneseq
    %v2106 = vshrl.u32 %v2105, 7
    %v2107 = vsub.s32 %v2104, %v2106
    %v2108 = vrot.slane %v2101, %v2107
    %2110 = vmatprep.subr.mxu0 %v291
    %2111 = vmatpush1.msra.mxu0 %v290
    %2112 = vmatprep.subr.mxu0 %v294
    %2113 = vmatpush1.msra.mxu0 %v293
    %2114 = vmatprep.subr.mxu0 %v297
    %2115 = vmatpush1.msra.mxu0 %v296
    %2116 = vmatprep.subr.mxu0 %v300
    %2117 = vmatpush1.msra.mxu0 %v299
    %2118 = vmatprep.subr.mxu0 %v303
    %2119 = vmatpush1.msra.mxu0 %v302
    %2120 = vmatprep.subr.mxu0 %v306
    %2121 = vmatpush1.msra.mxu0 %v305
    %2122 = vmatprep.subr.mxu0 %v309
    %2123 = vmatpush1.msra.mxu0 %v308
    %2124 = vmatprep.subr.mxu0 %v312
    %2125 = vmatpush1.msra.mxu0 %v311
    %2126 = vmatprep.subr.mxu0 %v315
    %2127 = vmatpush1.msra.mxu0 %v314
    %2128 = vmatprep.subr.mxu0 %v318
    %2129 = vmatpush1.msra.mxu0 %v317
    %2130 = vmatprep.subr.mxu0 %v321
    %2131 = vmatpush1.msra.mxu0 %v320
    %2132 = vmatprep.subr.mxu0 %v324
    %2133 = vmatpush1.msra.mxu0 %v323
    %2134 = vmatprep.subr.mxu0 %v327
    %2135 = vmatpush1.msra.mxu0 %v326
    %2136 = vmatprep.subr.mxu0 %v330
    %2137 = vmatpush1.msra.mxu0 %v329
    %2138 = vmatprep.subr.mxu0 %v333
    %2139 = vmatpush1.msra.mxu0 %v332
    %2140 = vmatprep.subr.mxu0 %v336
    %2141 = vmatpush1.msra.mxu0 %v335
    %2142 = vmatprep.subr.mxu0 0.0
    %2143 = vmatpush1.msra.mxu0 0.0
    %2144 = vmatprep.subr.mxu0 0.0
    %2145 = vmatpush1.msra.mxu0 0.0
    %2146 = vmatprep.subr.mxu0 0.0
    %2147 = vmatpush1.msra.mxu0 0.0
    %2148 = vmatprep.subr.mxu0 0.0
    %2149 = vmatpush1.msra.mxu0 0.0
    %2150 = vmatprep.subr.mxu0 0.0
    %2151 = vmatpush1.msra.mxu0 0.0
    %2152 = vmatprep.subr.mxu0 0.0
    %2153 = vmatpush1.msra.mxu0 0.0
    %2154 = vmatprep.subr.mxu0 0.0
    %2155 = vmatpush1.msra.mxu0 0.0
    %2156 = vmatprep.subr.mxu0 0.0
    %2157 = vmatpush1.msra.mxu0 0.0
    %2158 = vmatprep.subr.mxu0 0.0
    %2159 = vmatpush1.msra.mxu0 0.0
    %2160 = vmatprep.subr.mxu0 0.0
    %2161 = vmatpush1.msra.mxu0 0.0
    %2162 = vmatprep.subr.mxu0 0.0
    %2163 = vmatpush1.msra.mxu0 0.0
    %2164 = vmatprep.subr.mxu0 0.0
    %2165 = vmatpush1.msra.mxu0 0.0
    %2166 = vmatprep.subr.mxu0 0.0
    %2167 = vmatpush1.msra.mxu0 0.0
    %2168 = vmatprep.subr.mxu0 0.0
    %2169 = vmatpush1.msra.mxu0 0.0
    %2170 = vmatprep.subr.mxu0 0.0
    %2171 = vmatpush1.msra.mxu0 0.0
    %2172 = vmatprep.subr.mxu0 0.0
    %2173 = vmatpush1.msra.mxu0 0.0
    %2174 = vmatprep.mubr.f32.mxu0 0.0
    %2175 = vmatmul.mubr.f32.gmra.mrb[0].mxu0 %v2108
    %v2176 = vpop.f32.mrb[0].mxu0
    %v2177 = vadd.f32 %v343, %v2176
    %v2178 = vpop.f32.mrb[0].mxu0
    %v2179 = vadd.f32 %v347, %v2178
    %2180 = vdwg.mxu0
    %2181 = vmatprep.subr.mxu0 0.0
    %2182 = vmatpush1.msra.mxu0 %v292
    %2183 = vmatprep.subr.mxu0 0.0
    %2184 = vmatpush1.msra.mxu0 %v295
    %2185 = vmatprep.subr.mxu0 0.0
    %2186 = vmatpush1.msra.mxu0 %v298
    %2187 = vmatprep.subr.mxu0 0.0
    %2188 = vmatpush1.msra.mxu0 %v301
    %2189 = vmatprep.subr.mxu0 0.0
    %2190 = vmatpush1.msra.mxu0 %v304
    %2191 = vmatprep.subr.mxu0 0.0
    %2192 = vmatpush1.msra.mxu0 %v307
    %2193 = vmatprep.subr.mxu0 0.0
    %2194 = vmatpush1.msra.mxu0 %v310
    %2195 = vmatprep.subr.mxu0 0.0
    %2196 = vmatpush1.msra.mxu0 %v313
    %2197 = vmatprep.subr.mxu0 0.0
    %2198 = vmatpush1.msra.mxu0 %v316
    %2199 = vmatprep.subr.mxu0 0.0
    %2200 = vmatpush1.msra.mxu0 %v319
    %2201 = vmatprep.subr.mxu0 0.0
    %2202 = vmatpush1.msra.mxu0 %v322
    %2203 = vmatprep.subr.mxu0 0.0
    %2204 = vmatpush1.msra.mxu0 %v325
    %2205 = vmatprep.subr.mxu0 0.0
    %2206 = vmatpush1.msra.mxu0 %v328
    %2207 = vmatprep.subr.mxu0 0.0
    %2208 = vmatpush1.msra.mxu0 %v331
    %2209 = vmatprep.subr.mxu0 0.0
    %2210 = vmatpush1.msra.mxu0 %v334
    %2211 = vmatprep.subr.mxu0 0.0
    %2212 = vmatpush1.msra.mxu0 %v337
    %2213 = vmatprep.subr.mxu0 0.0
    %2214 = vmatpush1.msra.mxu0 0.0
    %2215 = vmatprep.subr.mxu0 0.0
    %2216 = vmatpush1.msra.mxu0 0.0
    %2217 = vmatprep.subr.mxu0 0.0
    %2218 = vmatpush1.msra.mxu0 0.0
    %2219 = vmatprep.subr.mxu0 0.0
    %2220 = vmatpush1.msra.mxu0 0.0
    %2221 = vmatprep.subr.mxu0 0.0
    %2222 = vmatpush1.msra.mxu0 0.0
    %2223 = vmatprep.subr.mxu0 0.0
    %2224 = vmatpush1.msra.mxu0 0.0
    %2225 = vmatprep.subr.mxu0 0.0
    %2226 = vmatpush1.msra.mxu0 0.0
    %2227 = vmatprep.subr.mxu0 0.0
    %2228 = vmatpush1.msra.mxu0 0.0
    %2229 = vmatprep.subr.mxu0 0.0
    %2230 = vmatpush1.msra.mxu0 0.0
    %2231 = vmatprep.subr.mxu0 0.0
    %2232 = vmatpush1.msra.mxu0 0.0
    %2233 = vmatprep.subr.mxu0 0.0
    %2234 = vmatpush1.msra.mxu0 0.0
    %2235 = vmatprep.subr.mxu0 0.0
    %2236 = vmatpush1.msra.mxu0 0.0
    %2237 = vmatprep.subr.mxu0 0.0
    %2238 = vmatpush1.msra.mxu0 0.0
    %2239 = vmatprep.subr.mxu0 0.0
    %2240 = vmatpush1.msra.mxu0 0.0
    %2241 = vmatprep.subr.mxu0 0.0
    %2242 = vmatpush1.msra.mxu0 0.0
    %2243 = vmatprep.subr.mxu0 0.0
    %2244 = vmatpush1.msra.mxu0 0.0
    %2245 = vmatprep.mubr.f32.mxu0 0.0
    %2246 = vmatmul.mubr.f32.gmra.mrb[0].mxu0 %v2108
    %v2247 = vpop.f32.mrb[0].mxu0
    %v2248 = vadd.f32 %v351, %v2247
    %v2249 = vpop.f32.mrb[0].mxu0
    %2250 = vdwg.mxu0
    %v2253 = vunpack.c.l.s4 1966171168
    %v2254 = vunpack.c.0.s8 %v2253
    %v2255 = vlaneseq
    %v2256 = vshrl.u32 %v2255, 7
    %v2257 = vsub.s32 %v2254, %v2256
    %v2258 = vrot.slane %v2177, %v2257
    %v2259 = vcombine.high %v2258, %v2258
    %v2261 = vunpack.c.l.s4 1966171168
    %v2262 = vunpack.c.0.s8 %v2261
    %v2263 = vlaneseq
    %v2264 = vshrl.u32 %v2263, 7
    %v2265 = vsub.s32 %v2262, %v2264
    %v2266 = vrot.slane %v2258, %v2265
    %v2268 = vunpack.c.l.s4 1966171168
    %v2269 = vunpack.c.0.s8 %v2268
    %v2270 = vlaneseq
    %v2271 = vshrl.u32 %v2270, 7
    %v2272 = vsub.s32 %v2269, %v2271
    %v2273 = vrot.slane %v2259, %v2272
    %v2276 = vadd.f32 %v2089, %v2266
    %v2277 = vadd.f32 %v2091, %v2273
    %v2278 = vxor.u32 %v2276, 2147483648
    %v2279 = vxor.u32 %v2277, 2147483648
    %v2280 = vmul.f32 %v2278, 1.442695
    %v2281 = vpow.pop %v2280
    %v2282 = vmul.f32 %v2279, 1.442695
    %v2283 = vpow.pop %v2282
    %v2284 = vadd.f32 %v2281, 1.0
    %v2285 = vadd.f32 %v2283, 1.0
    %v2286 = vrcp.pop %v2284
    %v2287 = vmul.f32 1.0, %v2286
    %v2288 = vrcp.pop %v2285
    %v2289 = vmul.f32 1.0, %v2288
    %v2292 = vrot.slane %v2089, 1
    %v2293 = vrot.slane %v2091, 1
    %v2298 = vunpack.c.l.s4 1966171168
    %v2299 = vunpack.c.0.s8 %v2298
    %v2300 = vlaneseq
    %v2301 = vshrl.u32 %v2300, 7
    %v2302 = vsub.s32 %v2299, %v2301
    %v2303 = vrot.slane %v2179, %v2302
    %v2304 = vcombine.high %v2303, %v2303
    %v2306 = vunpack.c.l.s4 1966171168
    %v2307 = vunpack.c.0.s8 %v2306
    %v2308 = vlaneseq
    %v2309 = vshrl.u32 %v2308, 7
    %v2310 = vsub.s32 %v2307, %v2309
    %v2311 = vrot.slane %v2303, %v2310
    %v2313 = vunpack.c.l.s4 1966171168
    %v2314 = vunpack.c.0.s8 %v2313
    %v2315 = vlaneseq
    %v2316 = vshrl.u32 %v2315, 7
    %v2317 = vsub.s32 %v2314, %v2316
    %v2318 = vrot.slane %v2304, %v2317
    %v2321 = vadd.f32 %v2292, %v2311
    %v2322 = vadd.f32 %v2293, %v2318
    %v2323 = vxor.u32 %v2321, 2147483648
    %v2324 = vxor.u32 %v2322, 2147483648
    %v2325 = vmul.f32 %v2323, 1.442695
    %v2326 = vpow.pop %v2325
    %v2327 = vmul.f32 %v2324, 1.442695
    %v2328 = vpow.pop %v2327
    %v2329 = vadd.f32 %v2326, 1.0
    %v2330 = vadd.f32 %v2328, 1.0
    %v2331 = vrcp.pop %v2329
    %v2332 = vmul.f32 1.0, %v2331
    %v2333 = vrcp.pop %v2330
    %v2334 = vmul.f32 1.0, %v2333
    %v2337 = vunpack.c.l.s4 1966171168
    %v2338 = vunpack.c.0.s8 %v2337
    %v2339 = vlaneseq
    %v2340 = vshrl.u32 %v2339, 7
    %v2341 = vsub.s32 %v2338, %v2340
    %v2342 = vrot.slane %v2248, %v2341
    %v2343 = vcombine.high %v2342, %v2342
    %v2345 = vunpack.c.l.s4 1966171168
    %v2346 = vunpack.c.0.s8 %v2345
    %v2347 = vlaneseq
    %v2348 = vshrl.u32 %v2347, 7
    %v2349 = vsub.s32 %v2346, %v2348
    %v2350 = vrot.slane %v2342, %v2349
    %v2352 = vunpack.c.l.s4 1966171168
    %v2353 = vunpack.c.0.s8 %v2352
    %v2354 = vlaneseq
    %v2355 = vshrl.u32 %v2354, 7
    %v2356 = vsub.s32 %v2353, %v2355
    %v2357 = vrot.slane %v2343, %v2356
    %v2360 = vmul.f32 %v2287, %v2350
    %v2361 = vmul.f32 %v2289, %v2357
    %v2362 = vrot.slane %v2089, 2
    %v2363 = vrot.slane %v2091, 2
    %v2366 = vadd.f32 %v2362, %v2360
    %v2367 = vadd.f32 %v2363, %v2361
    %v2368 = vtanh.pop %v2366
    %v2369 = vtanh.pop %v2367
    %v2370 = vsub.f32 1.0, %v2332
    %v2371 = vsub.f32 1.0, %v2334
    %v2372 = vmul.f32 %v2370, %v2368
    %v2373 = vmul.f32 %v2371, %v2369
    %v2374 = vmul.f32 %v2332, %v2084
    %v2375 = vmul.f32 %v2334, %v2085
    %v2376 = vadd.f32 %v2372, %v2374
    %v2377 = vadd.f32 %v2373, %v2375
    %2378 = vst [vmem:[#allocation3 + $0x6] sm:$0x1] %v2376
    %2379 = vst [vmem:[#allocation3 + $0xe] sm:$0x1] %v2377
    %s2380 = scalar_lea.vmem [#allocation2], 7
    %v2381 = vld [vmem:[%s2380] ss:$8 sm:$0x7]
    %s2382 = scalar_lea.vmem [#allocation2], 31
    %v2383 = vld [vmem:[%s2382] ss:$8 sm:$0x7]
    %v2386 = vcombine.low %v2376, %v2377
    %v2388 = vunpack.c.l.s4 1966171168
    %v2389 = vunpack.c.0.s8 %v2388
    %v2390 = vlaneseq
    %v2391 = vshrl.u32 %v2390, 7
    %v2392 = vsub.s32 %v2389, %v2391
    %v2393 = vrot.slane %v2386, %v2392
    %v2395 = vunpack.c.l.s4 1966171168
    %v2396 = vunpack.c.0.s8 %v2395
    %v2397 = vlaneseq
    %v2398 = vshrl.u32 %v2397, 7
    %v2399 = vsub.s32 %v2396, %v2398
    %v2400 = vrot.slane %v2393, %v2399
    %2402 = vmatprep.subr.mxu0 %v291
    %2403 = vmatpush1.msra.mxu0 %v290
    %2404 = vmatprep.subr.mxu0 %v294
    %2405 = vmatpush1.msra.mxu0 %v293
    %2406 = vmatprep.subr.mxu0 %v297
    %2407 = vmatpush1.msra.mxu0 %v296
    %2408 = vmatprep.subr.mxu0 %v300
    %2409 = vmatpush1.msra.mxu0 %v299
    %2410 = vmatprep.subr.mxu0 %v303
    %2411 = vmatpush1.msra.mxu0 %v302
    %2412 = vmatprep.subr.mxu0 %v306
    %2413 = vmatpush1.msra.mxu0 %v305
    %2414 = vmatprep.subr.mxu0 %v309
    %2415 = vmatpush1.msra.mxu0 %v308
    %2416 = vmatprep.subr.mxu0 %v312
    %2417 = vmatpush1.msra.mxu0 %v311
    %2418 = vmatprep.subr.mxu0 %v315
    %2419 = vmatpush1.msra.mxu0 %v314
    %2420 = vmatprep.subr.mxu0 %v318
    %2421 = vmatpush1.msra.mxu0 %v317
    %2422 = vmatprep.subr.mxu0 %v321
    %2423 = vmatpush1.msra.mxu0 %v320
    %2424 = vmatprep.subr.mxu0 %v324
    %2425 = vmatpush1.msra.mxu0 %v323
    %2426 = vmatprep.subr.mxu0 %v327
    %2427 = vmatpush1.msra.mxu0 %v326
    %2428 = vmatprep.subr.mxu0 %v330
    %2429 = vmatpush1.msra.mxu0 %v329
    %2430 = vmatprep.subr.mxu0 %v333
    %2431 = vmatpush1.msra.mxu0 %v332
    %2432 = vmatprep.subr.mxu0 %v336
    %2433 = vmatpush1.msra.mxu0 %v335
    %2434 = vmatprep.subr.mxu0 0.0
    %2435 = vmatpush1.msra.mxu0 0.0
    %2436 = vmatprep.subr.mxu0 0.0
    %2437 = vmatpush1.msra.mxu0 0.0
    %2438 = vmatprep.subr.mxu0 0.0
    %2439 = vmatpush1.msra.mxu0 0.0
    %2440 = vmatprep.subr.mxu0 0.0
    %2441 = vmatpush1.msra.mxu0 0.0
    %2442 = vmatprep.subr.mxu0 0.0
    %2443 = vmatpush1.msra.mxu0 0.0
    %2444 = vmatprep.subr.mxu0 0.0
    %2445 = vmatpush1.msra.mxu0 0.0
    %2446 = vmatprep.subr.mxu0 0.0
    %2447 = vmatpush1.msra.mxu0 0.0
    %2448 = vmatprep.subr.mxu0 0.0
    %2449 = vmatpush1.msra.mxu0 0.0
    %2450 = vmatprep.subr.mxu0 0.0
    %2451 = vmatpush1.msra.mxu0 0.0
    %2452 = vmatprep.subr.mxu0 0.0
    %2453 = vmatpush1.msra.mxu0 0.0
    %2454 = vmatprep.subr.mxu0 0.0
    %2455 = vmatpush1.msra.mxu0 0.0
    %2456 = vmatprep.subr.mxu0 0.0
    %2457 = vmatpush1.msra.mxu0 0.0
    %2458 = vmatprep.subr.mxu0 0.0
    %2459 = vmatpush1.msra.mxu0 0.0
    %2460 = vmatprep.subr.mxu0 0.0
    %2461 = vmatpush1.msra.mxu0 0.0
    %2462 = vmatprep.subr.mxu0 0.0
    %2463 = vmatpush1.msra.mxu0 0.0
    %2464 = vmatprep.subr.mxu0 0.0
    %2465 = vmatpush1.msra.mxu0 0.0
    %2466 = vmatprep.mubr.f32.mxu0 0.0
    %2467 = vmatmul.mubr.f32.gmra.mrb[0].mxu0 %v2400
    %v2468 = vpop.f32.mrb[0].mxu0
    %v2469 = vadd.f32 %v343, %v2468
    %v2470 = vpop.f32.mrb[0].mxu0
    %v2471 = vadd.f32 %v347, %v2470
    %2472 = vdwg.mxu0
    %2473 = vmatprep.subr.mxu0 0.0
    %2474 = vmatpush1.msra.mxu0 %v292
    %2475 = vmatprep.subr.mxu0 0.0
    %2476 = vmatpush1.msra.mxu0 %v295
    %2477 = vmatprep.subr.mxu0 0.0
    %2478 = vmatpush1.msra.mxu0 %v298
    %2479 = vmatprep.subr.mxu0 0.0
    %2480 = vmatpush1.msra.mxu0 %v301
    %2481 = vmatprep.subr.mxu0 0.0
    %2482 = vmatpush1.msra.mxu0 %v304
    %2483 = vmatprep.subr.mxu0 0.0
    %2484 = vmatpush1.msra.mxu0 %v307
    %2485 = vmatprep.subr.mxu0 0.0
    %2486 = vmatpush1.msra.mxu0 %v310
    %2487 = vmatprep.subr.mxu0 0.0
    %2488 = vmatpush1.msra.mxu0 %v313
    %2489 = vmatprep.subr.mxu0 0.0
    %2490 = vmatpush1.msra.mxu0 %v316
    %2491 = vmatprep.subr.mxu0 0.0
    %2492 = vmatpush1.msra.mxu0 %v319
    %2493 = vmatprep.subr.mxu0 0.0
    %2494 = vmatpush1.msra.mxu0 %v322
    %2495 = vmatprep.subr.mxu0 0.0
    %2496 = vmatpush1.msra.mxu0 %v325
    %2497 = vmatprep.subr.mxu0 0.0
    %2498 = vmatpush1.msra.mxu0 %v328
    %2499 = vmatprep.subr.mxu0 0.0
    %2500 = vmatpush1.msra.mxu0 %v331
    %2501 = vmatprep.subr.mxu0 0.0
    %2502 = vmatpush1.msra.mxu0 %v334
    %2503 = vmatprep.subr.mxu0 0.0
    %2504 = vmatpush1.msra.mxu0 %v337
    %2505 = vmatprep.subr.mxu0 0.0
    %2506 = vmatpush1.msra.mxu0 0.0
    %2507 = vmatprep.subr.mxu0 0.0
    %2508 = vmatpush1.msra.mxu0 0.0
    %2509 = vmatprep.subr.mxu0 0.0
    %2510 = vmatpush1.msra.mxu0 0.0
    %2511 = vmatprep.subr.mxu0 0.0
    %2512 = vmatpush1.msra.mxu0 0.0
    %2513 = vmatprep.subr.mxu0 0.0
    %2514 = vmatpush1.msra.mxu0 0.0
    %2515 = vmatprep.subr.mxu0 0.0
    %2516 = vmatpush1.msra.mxu0 0.0
    %2517 = vmatprep.subr.mxu0 0.0
    %2518 = vmatpush1.msra.mxu0 0.0
    %2519 = vmatprep.subr.mxu0 0.0
    %2520 = vmatpush1.msra.mxu0 0.0
    %2521 = vmatprep.subr.mxu0 0.0
    %2522 = vmatpush1.msra.mxu0 0.0
    %2523 = vmatprep.subr.mxu0 0.0
    %2524 = vmatpush1.msra.mxu0 0.0
    %2525 = vmatprep.subr.mxu0 0.0
    %2526 = vmatpush1.msra.mxu0 0.0
    %2527 = vmatprep.subr.mxu0 0.0
    %2528 = vmatpush1.msra.mxu0 0.0
    %2529 = vmatprep.subr.mxu0 0.0
    %2530 = vmatpush1.msra.mxu0 0.0
    %2531 = vmatprep.subr.mxu0 0.0
    %2532 = vmatpush1.msra.mxu0 0.0
    %2533 = vmatprep.subr.mxu0 0.0
    %2534 = vmatpush1.msra.mxu0 0.0
    %2535 = vmatprep.subr.mxu0 0.0
    %2536 = vmatpush1.msra.mxu0 0.0
    %2537 = vmatprep.mubr.f32.mxu0 0.0
    %2538 = vmatmul.mubr.f32.gmra.mrb[0].mxu0 %v2400
    %v2539 = vpop.f32.mrb[0].mxu0
    %v2540 = vadd.f32 %v351, %v2539
    %v2541 = vpop.f32.mrb[0].mxu0
    %2542 = vdwg.mxu0
    %v2545 = vunpack.c.l.s4 1966171168
    %v2546 = vunpack.c.0.s8 %v2545
    %v2547 = vlaneseq
    %v2548 = vshrl.u32 %v2547, 7
    %v2549 = vsub.s32 %v2546, %v2548
    %v2550 = vrot.slane %v2469, %v2549
    %v2551 = vcombine.high %v2550, %v2550
    %v2553 = vunpack.c.l.s4 1966171168
    %v2554 = vunpack.c.0.s8 %v2553
    %v2555 = vlaneseq
    %v2556 = vshrl.u32 %v2555, 7
    %v2557 = vsub.s32 %v2554, %v2556
    %v2558 = vrot.slane %v2550, %v2557
    %v2560 = vunpack.c.l.s4 1966171168
    %v2561 = vunpack.c.0.s8 %v2560
    %v2562 = vlaneseq
    %v2563 = vshrl.u32 %v2562, 7
    %v2564 = vsub.s32 %v2561, %v2563
    %v2565 = vrot.slane %v2551, %v2564
    %v2568 = vadd.f32 %v2381, %v2558
    %v2569 = vadd.f32 %v2383, %v2565
    %v2570 = vxor.u32 %v2568, 2147483648
    %v2571 = vxor.u32 %v2569, 2147483648
    %v2572 = vmul.f32 %v2570, 1.442695
    %v2573 = vpow.pop %v2572
    %v2574 = vmul.f32 %v2571, 1.442695
    %v2575 = vpow.pop %v2574
    %v2576 = vadd.f32 %v2573, 1.0
    %v2577 = vadd.f32 %v2575, 1.0
    %v2578 = vrcp.pop %v2576
    %v2579 = vmul.f32 1.0, %v2578
    %v2580 = vrcp.pop %v2577
    %v2581 = vmul.f32 1.0, %v2580
    %v2584 = vrot.slane %v2381, 1
    %v2585 = vrot.slane %v2383, 1
    %v2590 = vunpack.c.l.s4 1966171168
    %v2591 = vunpack.c.0.s8 %v2590
    %v2592 = vlaneseq
    %v2593 = vshrl.u32 %v2592, 7
    %v2594 = vsub.s32 %v2591, %v2593
    %v2595 = vrot.slane %v2471, %v2594
    %v2596 = vcombine.high %v2595, %v2595
    %v2598 = vunpack.c.l.s4 1966171168
    %v2599 = vunpack.c.0.s8 %v2598
    %v2600 = vlaneseq
    %v2601 = vshrl.u32 %v2600, 7
    %v2602 = vsub.s32 %v2599, %v2601
    %v2603 = vrot.slane %v2595, %v2602
    %v2605 = vunpack.c.l.s4 1966171168
    %v2606 = vunpack.c.0.s8 %v2605
    %v2607 = vlaneseq
    %v2608 = vshrl.u32 %v2607, 7
    %v2609 = vsub.s32 %v2606, %v2608
    %v2610 = vrot.slane %v2596, %v2609
    %v2613 = vadd.f32 %v2584, %v2603
    %v2614 = vadd.f32 %v2585, %v2610
    %v2615 = vxor.u32 %v2613, 2147483648
    %v2616 = vxor.u32 %v2614, 2147483648
    %v2617 = vmul.f32 %v2615, 1.442695
    %v2618 = vpow.pop %v2617
    %v2619 = vmul.f32 %v2616, 1.442695
    %v2620 = vpow.pop %v2619
    %v2621 = vadd.f32 %v2618, 1.0
    %v2622 = vadd.f32 %v2620, 1.0
    %v2623 = vrcp.pop %v2621
    %v2624 = vmul.f32 1.0, %v2623
    %v2625 = vrcp.pop %v2622
    %v2626 = vmul.f32 1.0, %v2625
    %v2629 = vunpack.c.l.s4 1966171168
    %v2630 = vunpack.c.0.s8 %v2629
    %v2631 = vlaneseq
    %v2632 = vshrl.u32 %v2631, 7
    %v2633 = vsub.s32 %v2630, %v2632
    %v2634 = vrot.slane %v2540, %v2633
    %v2635 = vcombine.high %v2634, %v2634
    %v2637 = vunpack.c.l.s4 1966171168
    %v2638 = vunpack.c.0.s8 %v2637
    %v2639 = vlaneseq
    %v2640 = vshrl.u32 %v2639, 7
    %v2641 = vsub.s32 %v2638, %v2640
    %v2642 = vrot.slane %v2634, %v2641
    %v2644 = vunpack.c.l.s4 1966171168
    %v2645 = vunpack.c.0.s8 %v2644
    %v2646 = vlaneseq
    %v2647 = vshrl.u32 %v2646, 7
    %v2648 = vsub.s32 %v2645, %v2647
    %v2649 = vrot.slane %v2635, %v2648
    %v2652 = vmul.f32 %v2579, %v2642
    %v2653 = vmul.f32 %v2581, %v2649
    %v2654 = vrot.slane %v2381, 2
    %v2655 = vrot.slane %v2383, 2
    %v2658 = vadd.f32 %v2654, %v2652
    %v2659 = vadd.f32 %v2655, %v2653
    %v2660 = vtanh.pop %v2658
    %v2661 = vtanh.pop %v2659
    %v2662 = vsub.f32 1.0, %v2624
    %v2663 = vsub.f32 1.0, %v2626
    %v2664 = vmul.f32 %v2662, %v2660
    %v2665 = vmul.f32 %v2663, %v2661
    %v2666 = vmul.f32 %v2624, %v2376
    %v2667 = vmul.f32 %v2626, %v2377
    %v2668 = vadd.f32 %v2664, %v2666
    %v2669 = vadd.f32 %v2665, %v2667
    %2670 = vst [vmem:[#allocation3 + $0x7] sm:$0x1] %v2668
    %2671 = vst [vmem:[#allocation3 + $0xf] sm:$0x1] %v2669
    %v2674 = vcombine.low %v2668, %v2669
    %v2676 = vunpack.c.l.s4 1966171168
    %v2677 = vunpack.c.0.s8 %v2676
    %v2678 = vlaneseq
    %v2679 = vshrl.u32 %v2678, 7
    %v2680 = vsub.s32 %v2677, %v2679
    %v2681 = vrot.slane %v2674, %v2680
    %v2683 = vunpack.c.l.s4 1966171168
    %v2684 = vunpack.c.0.s8 %v2683
    %v2685 = vlaneseq
    %v2686 = vshrl.u32 %v2685, 7
    %v2687 = vsub.s32 %v2684, %v2686
    %v2688 = vrot.slane %v2681, %v2687
    %2690 = vst [vmem:[#allocation11] sm:$0x3] %v2688
    %v2691 = vld [vmem:[#allocation3] sm:$0xff]
    %v2692 = vld [vmem:[#allocation3 + $0x8] sm:$0xff]
    %2693 = vst [vmem:[#allocation10] sm:$0xff] %v2691
    %2694 = vst [vmem:[#allocation10 + $0x8] sm:$0xff] %v2692
    // Predicated region
    $region34: #{tpu_custom_call.1} parent=1 // pred_check
      _
    $region35: #{tpu_custom_call.1} parent=1 // pred_check_branch
      %2696 = sbr.rel (0) target = $region37
    $region36: #{tpu_custom_call.1} parent=1 // pred_region
      %s2698 = ssub.s32 256, 256
      %2699 = vsyncadd [#allocation6], %s2698
      %s2700 = sshll.u32 [#allocation10], 4
      %s2701 = int_to_ptr.vmem [resolvable:$true] %s2700
      %2706 = dma.vmem_to_hbm [thread:$0]  %s2701, 256, %s5, [#allocation6], 128, 128, 8
    $region37: #{tpu_custom_call.1} parent=1 // pred_fallthru
      _
    // Predicated region
    $region38: #{tpu_custom_call.1} parent=1 // pred_check
      _
    $region39: #{tpu_custom_call.1} parent=1 // pred_check_branch
      %2708 = sbr.rel (0) target = $region41
    $region40: #{tpu_custom_call.1} parent=1 // pred_region
      %s2710 = ssub.s32 32, 32
      %2711 = vsyncadd [#allocation12], %s2710
      %s2713 = sshll.u32 [#allocation11], 4
      %s2714 = int_to_ptr.vmem [resolvable:$true] %s2713
      %2716 = dma.vmem_to_hbm [thread:$0]  %s2714, 32, %s6, [#allocation12]
    $region41: #{tpu_custom_call.1} parent=1 // pred_fallthru
      _
    // Predicated region
    $region42: #{tpu_custom_call.1} parent=1 // pred_check
      _
    $region43: #{tpu_custom_call.1} parent=1 // pred_check_branch
      %2718 = sbr.rel (0) target = $region45
    $region44: #{tpu_custom_call.1} parent=1 // pred_region
      %2719 = dma.done [#allocation6], 256
    $region45: #{tpu_custom_call.1} parent=1 // pred_fallthru
      _
    // Predicated region
    $region46: #{tpu_custom_call.1} parent=1 // pred_check
      _
    $region47: #{tpu_custom_call.1} parent=1 // pred_check_branch
      %2721 = sbr.rel (0) target = $region49
    $region48: #{tpu_custom_call.1} parent=1 // pred_region
      %2722 = dma.done [#allocation12], 32
    $region49: #{tpu_custom_call.1} parent=1 // pred_fallthru
      _
    %2723 = vsyncpa [#allocation5], 1
    %2724 = vsyncpa [#allocation8], 1
    %2725 = vsyncpa [#allocation6], 1
    %2726 = vsyncpa [#allocation12], 1

</llo_original>
